<compile_context>
chip_gen: v7x
topology: tpu7x:2x2x1
jax: 0.10.0
libtpu: 0.0.40
codegen_flags: <defaults>
</compile_context>

<pallas_src>
import functools
import math

import jax
import jax.numpy as jnp
from jax.experimental import pallas as pl
from jax.experimental.pallas import tpu as pltpu

H1, H2, H3 = 2048, 256, 64


def _round_up(n, m):
    return ((n + m - 1) // m) * m


def classifier_kernel(x_ref, w1_ref, b1_ref, w2_ref, b2_ref,
                      w3_ref, b3_ref, w4_ref, b4_ref, o_ref):
    """One batch tile. x/weights are bf16 (native MXU input dtype); bias-add and
    ReLU happen in the f32 accumulator; output tile is stored as f32.
    Dropout from the PyTorch module is identity in eval mode."""
    # hidden_1 + ReLU
    h = jnp.dot(x_ref[...], w1_ref[...],
                preferred_element_type=jnp.float32) + b1_ref[...]
    h = jnp.maximum(h, 0.0)

    # hidden_2 + ReLU
    h = jnp.dot(h.astype(jnp.bfloat16), w2_ref[...],
                preferred_element_type=jnp.float32) + b2_ref[...]
    h = jnp.maximum(h, 0.0)

    # hidden_3 + ReLU
    h = jnp.dot(h.astype(jnp.bfloat16), w3_ref[...],
                preferred_element_type=jnp.float32) + b3_ref[...]
    h = jnp.maximum(h, 0.0)

    # classify (no activation)
    out = jnp.dot(h.astype(jnp.bfloat16), w4_ref[...],
                  preferred_element_type=jnp.float32) + b4_ref[...]
    o_ref[...] = out.astype(o_ref.dtype)


def _vmem_limit_bytes():
    # Generation-aware VMEM budget: ~3/4 of physical VMEM, capped at 96 MiB.
    # v5e/v6e (128 MiB) -> 96 MiB;  v7x (64 MiB per TensorCore) -> 48 MiB.
    try:
        cap = int(pltpu.get_tpu_info().vmem_capacity_bytes)
    except Exception:
        cap = 64 << 20  # conservative fallback (fits every generation)
    return min((cap * 3) // 4, 96 << 20)


@functools.partial(jax.jit, static_argnames=("block_b",))
def classifier_forward(x, params, *, block_b=512):
    """x: (B, in_dim) f32.  params: dict of (in, out) weights and (1, out) biases."""
    B, in_dim = x.shape
    out_dim = params["w4"].shape[1]

    # Lane-dense padding: pad in_dim / out_dim up to multiples of 128 so the
    # first MXU pass isn't mostly empty and the output store is unmasked.
    k_pad = _round_up(in_dim, 128)
    out_pad = _round_up(out_dim, 128)

    # Batch tiling: lets Pallas prefetch x tile i+1 / write back tile i-1 while
    # computing tile i, and bounds the (TB, 2048) f32 hidden_1 intermediate.
    tb = min(block_b, _round_up(B, 8))
    b_pad = _round_up(B, tb)

    bf16, f32 = jnp.bfloat16, jnp.float32

    x_p = jnp.pad(x.astype(bf16), ((0, b_pad - B), (0, k_pad - in_dim)))
    w1 = jnp.pad(params["w1"].astype(bf16), ((0, k_pad - in_dim), (0, 0)))
    w2 = params["w2"].astype(bf16)
    w3 = params["w3"].astype(bf16)
    w4 = jnp.pad(params["w4"].astype(bf16), ((0, 0), (0, out_pad - out_dim)))
    b1 = params["b1"].astype(f32)
    b2 = params["b2"].astype(f32)
    b3 = params["b3"].astype(f32)
    b4 = jnp.pad(params["b4"].astype(f32), ((0, 0), (0, out_pad - out_dim)))

    # TODO(synk): for very large in_dim (e.g. >= 8192) W1 should get its own
    # K-reduction grid axis with a VMEM accumulator; bf16 W1 keeps the resident
    # working set small enough for typical in_dim here.

    # Weights / biases are resident across batch tiles (same block every step).
    def resident(a):
        return pl.BlockSpec(a.shape, lambda i: (0, 0))

    in_specs = [
        pl.BlockSpec((tb, k_pad), lambda i: (i, 0)),   # x: tiled over batch
        resident(w1), resident(b1),
        resident(w2), resident(b2),
        resident(w3), resident(b3),
        resident(w4), resident(b4),
    ]
    out_spec = pl.BlockSpec((tb, out_pad), lambda i: (i, 0))

    flops = 2 * B * (in_dim * H1 + H1 * H2 + H2 * H3 + H3 * out_dim)
    bytes_accessed = (
        x_p.size * 2
        + (w1.size + w2.size + w3.size + w4.size) * 2
        + (b1.size + b2.size + b3.size + b4.size) * 4
        + b_pad * out_pad * 4
    )

    out = pl.pallas_call(
        classifier_kernel,
        out_shape=jax.ShapeDtypeStruct((b_pad, out_pad), f32),
        grid_spec=pltpu.PrefetchScalarGridSpec(
            num_scalar_prefetch=0,
            grid=(b_pad // tb,),
            in_specs=in_specs,
            out_specs=out_spec,
        ),
        compiler_params=pltpu.CompilerParams(
            # Batch tiles are independent -> shard across both TCs on v7x.
            dimension_semantics=("parallel",),
            vmem_limit_bytes=_vmem_limit_bytes(),
        ),
        cost_estimate=pl.CostEstimate(
            flops=flops, transcendentals=0, bytes_accessed=bytes_accessed),
    )(x_p, w1, b1, w2, b2, w3, b3, w4, b4)

    return out[:B, :out_dim]


def xavier_normal(key, fan_in, fan_out):
    std = math.sqrt(2.0 / (fan_in + fan_out))
    return std * jax.random.normal(key, (fan_in, fan_out), dtype=jnp.float32)


def init_params(key, in_dim, out_dim):
    k1, k2, k3, k4 = jax.random.split(key, 4)
    return {
        "w1": xavier_normal(k1, in_dim, H1), "b1": jnp.zeros((1, H1), jnp.float32),
        "w2": xavier_normal(k2, H1, H2),     "b2": jnp.zeros((1, H2), jnp.float32),
        "w3": xavier_normal(k3, H2, H3),     "b3": jnp.zeros((1, H3), jnp.float32),
        "w4": xavier_normal(k4, H3, out_dim), "b4": jnp.zeros((1, out_dim), jnp.float32),
    }


def reference_forward(x, p):
    # Mirrors the kernel's mixed precision: bf16 operands into the MXU,
    # f32 accumulation, bias-add / ReLU in f32.
    def dense(a, w, b):
        return jnp.dot(a.astype(jnp.bfloat16), w.astype(jnp.bfloat16),
                       preferred_element_type=jnp.float32) + b
    h = jnp.maximum(dense(x, p["w1"], p["b1"]), 0.0)
    h = jnp.maximum(dense(h, p["w2"], p["b2"]), 0.0)
    h = jnp.maximum(dense(h, p["w3"], p["b3"]), 0.0)
    return dense(h, p["w4"], p["b4"])


if __name__ == "__main__":
    key = jax.random.PRNGKey(0)
    kx, kp = jax.random.split(key)

    B, in_dim, out_dim = 8, 32, 16
    x = jax.random.normal(kx, (B, in_dim), dtype=jnp.float32)
    params = init_params(kp, in_dim, out_dim)

    out = jax.block_until_ready(classifier_forward(x, params))
    ref = reference_forward(x, params)
    assert out.shape == (B, out_dim)
    assert jnp.allclose(out, ref, atol=1e-2, rtol=1e-2), \
        float(jnp.max(jnp.abs(out - ref)))

    # Also exercise the multi-tile batch grid path (grid = (3,)).
    B2 = 48
    x2 = jax.random.normal(kx, (B2, in_dim), dtype=jnp.float32)
    out2 = jax.block_until_ready(classifier_forward(x2, params, block_b=16))
    ref2 = reference_forward(x2, params)
    assert out2.shape == (B2, out_dim)
    assert jnp.allclose(out2, ref2, atol=1e-2, rtol=1e-2), \
        float(jnp.max(jnp.abs(out2 - ref2)))

    print("KERNEL_OK")
</pallas_src>

<mosaic_0001>
module attributes {stable_mosaic.version = 11 : i64} {
  func.func @classifier_kernel(%arg0: i32, %arg1: memref<8x128xbf16, #tpu.memory_space<vmem>>, %arg2: memref<128x2048xbf16, #tpu.memory_space<vmem>>, %arg3: memref<1x2048xf32, #tpu.memory_space<vmem>>, %arg4: memref<2048x256xbf16, #tpu.memory_space<vmem>>, %arg5: memref<1x256xf32, #tpu.memory_space<vmem>>, %arg6: memref<256x64xbf16, #tpu.memory_space<vmem>>, %arg7: memref<1x64xf32, #tpu.memory_space<vmem>>, %arg8: memref<64x128xbf16, #tpu.memory_space<vmem>>, %arg9: memref<1x128xf32, #tpu.memory_space<vmem>>, %arg10: memref<8x128xf32, #tpu.memory_space<vmem>>) attributes {dimension_semantics = [#tpu.dimension_semantics<parallel>], iteration_bounds = array<i64: 1>, scalar_prefetch = 0 : i64, scratch_operands = 0 : i64, tpu.core_type = #tpu.core_type<tc>, window_params = [{transform_indices = @transform_0, window_bounds = array<i64: 8, 128>}, {pipeline_mode = #tpu.pipeline_mode<synchronous>, transform_indices = @transform_1, window_bounds = array<i64: 128, 2048>}, {pipeline_mode = #tpu.pipeline_mode<synchronous>, transform_indices = @transform_2, window_bounds = array<i64: 1, 2048>}, {pipeline_mode = #tpu.pipeline_mode<synchronous>, transform_indices = @transform_3, window_bounds = array<i64: 2048, 256>}, {pipeline_mode = #tpu.pipeline_mode<synchronous>, transform_indices = @transform_4, window_bounds = array<i64: 1, 256>}, {pipeline_mode = #tpu.pipeline_mode<synchronous>, transform_indices = @transform_5, window_bounds = array<i64: 256, 64>}, {pipeline_mode = #tpu.pipeline_mode<synchronous>, transform_indices = @transform_6, window_bounds = array<i64: 1, 64>}, {pipeline_mode = #tpu.pipeline_mode<synchronous>, transform_indices = @transform_7, window_bounds = array<i64: 64, 128>}, {pipeline_mode = #tpu.pipeline_mode<synchronous>, transform_indices = @transform_8, window_bounds = array<i64: 1, 128>}, {transform_indices = @transform_9, window_bounds = array<i64: 8, 128>}]} {
    %c0 = arith.constant 0 : index
    %c0_0 = arith.constant 0 : index
    %0 = vector.load %arg1[%c0, %c0_0] : memref<8x128xbf16, #tpu.memory_space<vmem>>, vector<8x128xbf16>
    %c0_1 = arith.constant 0 : index
    %c0_2 = arith.constant 0 : index
    %1 = vector.load %arg2[%c0_1, %c0_2] : memref<128x2048xbf16, #tpu.memory_space<vmem>>, vector<128x2048xbf16>
    %cst = arith.constant dense<0.000000e+00> : vector<8x2048xf32>
    %2 = tpu.matmul %0, %1, %cst {dimension_numbers = #tpu.dot_dimension_numbers<[1], [0], [0], [1], [0, 0, 1, 1], [], []>} : vector<8x128xbf16>, vector<128x2048xbf16>, vector<8x2048xf32> -> vector<8x2048xf32>
    %c0_3 = arith.constant 0 : index
    %c0_4 = arith.constant 0 : index
    %3 = vector.load %arg3[%c0_3, %c0_4] : memref<1x2048xf32, #tpu.memory_space<vmem>>, vector<1x2048xf32>
    %4 = vector.broadcast %3 : vector<1x2048xf32> to vector<8x2048xf32>
    %5 = arith.addf %2, %4 : vector<8x2048xf32>
    %cst_5 = arith.constant 0.000000e+00 : f32
    %6 = vector.broadcast %cst_5 : f32 to vector<8x2048xf32>
    %7 = arith.maximumf %5, %6 : vector<8x2048xf32>
    %8 = arith.truncf %7 : vector<8x2048xf32> to vector<8x2048xbf16>
    %c0_6 = arith.constant 0 : index
    %c0_7 = arith.constant 0 : index
    %9 = vector.load %arg4[%c0_6, %c0_7] : memref<2048x256xbf16, #tpu.memory_space<vmem>>, vector<2048x256xbf16>
    %cst_8 = arith.constant dense<0.000000e+00> : vector<8x256xf32>
    %10 = tpu.matmul %8, %9, %cst_8 {dimension_numbers = #tpu.dot_dimension_numbers<[1], [0], [0], [1], [0, 0, 1, 1], [], []>} : vector<8x2048xbf16>, vector<2048x256xbf16>, vector<8x256xf32> -> vector<8x256xf32>
    %c0_9 = arith.constant 0 : index
    %c0_10 = arith.constant 0 : index
    %11 = vector.load %arg5[%c0_9, %c0_10] : memref<1x256xf32, #tpu.memory_space<vmem>>, vector<1x256xf32>
    %12 = vector.broadcast %11 : vector<1x256xf32> to vector<8x256xf32>
    %13 = arith.addf %10, %12 : vector<8x256xf32>
    %cst_11 = arith.constant 0.000000e+00 : f32
    %14 = vector.broadcast %cst_11 : f32 to vector<8x256xf32>
    %15 = arith.maximumf %13, %14 : vector<8x256xf32>
    %16 = arith.truncf %15 : vector<8x256xf32> to vector<8x256xbf16>
    %c0_12 = arith.constant 0 : index
    %c0_13 = arith.constant 0 : index
    %17 = vector.load %arg6[%c0_12, %c0_13] : memref<256x64xbf16, #tpu.memory_space<vmem>>, vector<256x64xbf16>
    %cst_14 = arith.constant dense<0.000000e+00> : vector<8x64xf32>
    %18 = tpu.matmul %16, %17, %cst_14 {dimension_numbers = #tpu.dot_dimension_numbers<[1], [0], [0], [1], [0, 0, 1, 1], [], []>} : vector<8x256xbf16>, vector<256x64xbf16>, vector<8x64xf32> -> vector<8x64xf32>
    %c0_15 = arith.constant 0 : index
    %c0_16 = arith.constant 0 : index
    %19 = vector.load %arg7[%c0_15, %c0_16] : memref<1x64xf32, #tpu.memory_space<vmem>>, vector<1x64xf32>
    %20 = vector.broadcast %19 : vector<1x64xf32> to vector<8x64xf32>
    %21 = arith.addf %18, %20 : vector<8x64xf32>
    %cst_17 = arith.constant 0.000000e+00 : f32
    %22 = vector.broadcast %cst_17 : f32 to vector<8x64xf32>
    %23 = arith.maximumf %21, %22 : vector<8x64xf32>
    %24 = arith.truncf %23 : vector<8x64xf32> to vector<8x64xbf16>
    %c0_18 = arith.constant 0 : index
    %c0_19 = arith.constant 0 : index
    %25 = vector.load %arg8[%c0_18, %c0_19] : memref<64x128xbf16, #tpu.memory_space<vmem>>, vector<64x128xbf16>
    %cst_20 = arith.constant dense<0.000000e+00> : vector<8x128xf32>
    %26 = tpu.matmul %24, %25, %cst_20 {dimension_numbers = #tpu.dot_dimension_numbers<[1], [0], [0], [1], [0, 0, 1, 1], [], []>} : vector<8x64xbf16>, vector<64x128xbf16>, vector<8x128xf32> -> vector<8x128xf32>
    %c0_21 = arith.constant 0 : index
    %c0_22 = arith.constant 0 : index
    %27 = vector.load %arg9[%c0_21, %c0_22] : memref<1x128xf32, #tpu.memory_space<vmem>>, vector<1x128xf32>
    %28 = vector.broadcast %27 : vector<1x128xf32> to vector<8x128xf32>
    %29 = arith.addf %26, %28 : vector<8x128xf32>
    %c0_23 = arith.constant 0 : index
    %c0_24 = arith.constant 0 : index
    %30 = vector.load %arg10[%c0_23, %c0_24] : memref<8x128xf32, #tpu.memory_space<vmem>>, vector<8x128xf32>
    tpu.vector_store %arg10[%c0_23, %c0_24], %29 {strides = array<i32>} : memref<8x128xf32, #tpu.memory_space<vmem>>, vector<8x128xf32>,
    return
  }
  func.func @transform_0(%arg0: i32) -> (i32, i32) {
    %c0_i32 = arith.constant 0 : i32
    %c0_i32_0 = arith.constant 0 : i32
    return %arg0, %c0_i32 : i32, i32
  }
  func.func @transform_1(%arg0: i32) -> (i32, i32) {
    %c0_i32 = arith.constant 0 : i32
    %c0_i32_0 = arith.constant 0 : i32
    %c0_i32_1 = arith.constant 0 : i32
    return %c0_i32, %c0_i32_0 : i32, i32
  }
  func.func @transform_2(%arg0: i32) -> (i32, i32) {
    %c0_i32 = arith.constant 0 : i32
    %c0_i32_0 = arith.constant 0 : i32
    %c0_i32_1 = arith.constant 0 : i32
    return %c0_i32, %c0_i32_0 : i32, i32
  }
  func.func @transform_3(%arg0: i32) -> (i32, i32) {
    %c0_i32 = arith.constant 0 : i32
    %c0_i32_0 = arith.constant 0 : i32
    %c0_i32_1 = arith.constant 0 : i32
    return %c0_i32, %c0_i32_0 : i32, i32
  }
  func.func @transform_4(%arg0: i32) -> (i32, i32) {
    %c0_i32 = arith.constant 0 : i32
    %c0_i32_0 = arith.constant 0 : i32
    %c0_i32_1 = arith.constant 0 : i32
    return %c0_i32, %c0_i32_0 : i32, i32
  }
  func.func @transform_5(%arg0: i32) -> (i32, i32) {
    %c0_i32 = arith.constant 0 : i32
    %c0_i32_0 = arith.constant 0 : i32
    %c0_i32_1 = arith.constant 0 : i32
    return %c0_i32, %c0_i32_0 : i32, i32
  }
  func.func @transform_6(%arg0: i32) -> (i32, i32) {
    %c0_i32 = arith.constant 0 : i32
    %c0_i32_0 = arith.constant 0 : i32
    %c0_i32_1 = arith.constant 0 : i32
    return %c0_i32, %c0_i32_0 : i32, i32
  }
  func.func @transform_7(%arg0: i32) -> (i32, i32) {
    %c0_i32 = arith.constant 0 : i32
    %c0_i32_0 = arith.constant 0 : i32
    %c0_i32_1 = arith.constant 0 : i32
    return %c0_i32, %c0_i32_0 : i32, i32
  }
  func.func @transform_8(%arg0: i32) -> (i32, i32) {
    %c0_i32 = arith.constant 0 : i32
    %c0_i32_0 = arith.constant 0 : i32
    %c0_i32_1 = arith.constant 0 : i32
    return %c0_i32, %c0_i32_0 : i32, i32
  }
  func.func @transform_9(%arg0: i32) -> (i32, i32) {
    %c0_i32 = arith.constant 0 : i32
    %c0_i32_0 = arith.constant 0 : i32
    return %arg0, %c0_i32 : i32, i32
  }
}

</mosaic_0001>

<llo_original>
// kernel: classifier_forward.1
$region0: #{classifier_forward.1}
  #allocation0 [shape = 'u32[]', space=smem, size = 0x4, offset = 0x4, fixed_abs, tag = 'smem constant byte address 0x4 - core index']
  #allocation1 [shape = 'u32[144,128]{1,0:T(1,128)}', space=vmem, size = 0x12000, scoped, tag = 'internal scratch']
  %s0 = inlined_call_operand.vmem [shape: bf16[8,128], index: 0, kind: input, shape index: {}]
  %s1 = inlined_call_operand.vmem [shape: bf16[128,2048], index: 1, kind: input, shape index: {}]
  %s2 = inlined_call_operand.vmem [shape: f32[1,2048], index: 2, kind: input, shape index: {}]
  %s3 = inlined_call_operand.vmem [shape: bf16[2048,256], index: 3, kind: input, shape index: {}]
  %s4 = inlined_call_operand.vmem [shape: f32[1,256], index: 4, kind: input, shape index: {}]
  %s5 = inlined_call_operand.vmem [shape: bf16[256,64], index: 5, kind: input, shape index: {}]
  %s6 = inlined_call_operand.vmem [shape: f32[1,64], index: 6, kind: input, shape index: {}]
  %s7 = inlined_call_operand.vmem [shape: bf16[64,128], index: 7, kind: input, shape index: {}]
  %s8 = inlined_call_operand.vmem [shape: f32[1,128], index: 8, kind: input, shape index: {}]
  %s9 = inlined_call_operand.hbm [shape: f32[8,128], index: 9, kind: output, shape index: {}]
  %s10 = sld [smem:[#allocation0]]
  $region46: #{classifier_forward.1} parent=0
    _
  %s12 = ssub.s32 1, %s10
  %s13 = scalar_select 0, %s12, %s10
  $region1: #{classifier_forward.1} parent=0
    #allocation2 [shape = 'u8[4096]{0}', space=vmem, size = 0x1000, scoped, tag = 'output window, operand 0, single buffered']
    #allocation3 [shape = 's32[1]{0}', space=sflag, size = 0x4, scoped, tag = 'scoped memory for classifier_forward.1']
    %14 = vsyncpa [#allocation3], 0
    // Predicated region
    $region2: #{classifier_forward.1} parent=1 // pred_check
      _
    $region3: #{classifier_forward.1} parent=1 // pred_check_branch
      %16 = sbr.rel (0) target = $region5
    $region4: #{classifier_forward.1} parent=1 // pred_region
      _
    $region5: #{classifier_forward.1} parent=1 // pred_fallthru
      _
    // Predicated region
    $region6: #{classifier_forward.1} parent=1 // pred_check
      _
    $region7: #{classifier_forward.1} parent=1 // pred_check_branch
      %18 = sbr.rel (0) target = $region9
    $region8: #{classifier_forward.1} parent=1 // pred_region
      _
    $region9: #{classifier_forward.1} parent=1 // pred_fallthru
      _
    // Predicated region
    $region10: #{classifier_forward.1} parent=1 // pred_check
      _
    $region11: #{classifier_forward.1} parent=1 // pred_check_branch
      %20 = sbr.rel (0) target = $region13
    $region12: #{classifier_forward.1} parent=1 // pred_region
      _
    $region13: #{classifier_forward.1} parent=1 // pred_fallthru
      _
    // Predicated region
    $region14: #{classifier_forward.1} parent=1 // pred_check
      _
    $region15: #{classifier_forward.1} parent=1 // pred_check_branch
      %22 = sbr.rel (0) target = $region17
    $region16: #{classifier_forward.1} parent=1 // pred_region
      _
    $region17: #{classifier_forward.1} parent=1 // pred_fallthru
      _
    // Predicated region
    $region18: #{classifier_forward.1} parent=1 // pred_check
      _
    $region19: #{classifier_forward.1} parent=1 // pred_check_branch
      %24 = sbr.rel (0) target = $region21
    $region20: #{classifier_forward.1} parent=1 // pred_region
      _
    $region21: #{classifier_forward.1} parent=1 // pred_fallthru
      _
    // Predicated region
    $region22: #{classifier_forward.1} parent=1 // pred_check
      _
    $region23: #{classifier_forward.1} parent=1 // pred_check_branch
      %26 = sbr.rel (0) target = $region25
    $region24: #{classifier_forward.1} parent=1 // pred_region
      _
    $region25: #{classifier_forward.1} parent=1 // pred_fallthru
      _
    // Predicated region
    $region26: #{classifier_forward.1} parent=1 // pred_check
      _
    $region27: #{classifier_forward.1} parent=1 // pred_check_branch
      %28 = sbr.rel (0) target = $region29
    $region28: #{classifier_forward.1} parent=1 // pred_region
      _
    $region29: #{classifier_forward.1} parent=1 // pred_fallthru
      _
    // Predicated region
    $region30: #{classifier_forward.1} parent=1 // pred_check
      _
    $region31: #{classifier_forward.1} parent=1 // pred_check_branch
      %30 = sbr.rel (0) target = $region33
    $region32: #{classifier_forward.1} parent=1 // pred_region
      _
    $region33: #{classifier_forward.1} parent=1 // pred_fallthru
      _
    // Predicated region
    $region34: #{classifier_forward.1} parent=1 // pred_check
      _
    $region35: #{classifier_forward.1} parent=1 // pred_check_branch
      %32 = sbr.rel (0) target = $region37
    $region36: #{classifier_forward.1} parent=1 // pred_region
      _
    $region37: #{classifier_forward.1} parent=1 // pred_fallthru
      _
    %v34 = vld [vmem:[%s0] sm:$0xf]
    %v35 = vld [vmem:[%s1] sm:$0xff]
    %v36 = vld [vmem:[%s1 + $0x8] sm:$0xff]
    %v37 = vld [vmem:[%s1 + $0x10] sm:$0xff]
    %v38 = vld [vmem:[%s1 + $0x18] sm:$0xff]
    %v39 = vld [vmem:[%s1 + $0x20] sm:$0xff]
    %v40 = vld [vmem:[%s1 + $0x28] sm:$0xff]
    %v41 = vld [vmem:[%s1 + $0x30] sm:$0xff]
    %v42 = vld [vmem:[%s1 + $0x38] sm:$0xff]
    %v43 = vld [vmem:[%s1 + $0x40] sm:$0xff]
    %v44 = vld [vmem:[%s1 + $0x48] sm:$0xff]
    %v45 = vld [vmem:[%s1 + $0x50] sm:$0xff]
    %v46 = vld [vmem:[%s1 + $0x58] sm:$0xff]
    %v47 = vld [vmem:[%s1 + $0x60] sm:$0xff]
    %v48 = vld [vmem:[%s1 + $0x68] sm:$0xff]
    %v49 = vld [vmem:[%s1 + $0x70] sm:$0xff]
    %v50 = vld [vmem:[%s1 + $0x78] sm:$0xff]
    %v51 = vld [vmem:[%s1 + $0x80] sm:$0xff]
    %v52 = vld [vmem:[%s1 + $0x88] sm:$0xff]
    %v53 = vld [vmem:[%s1 + $0x90] sm:$0xff]
    %v54 = vld [vmem:[%s1 + $0x98] sm:$0xff]
    %v55 = vld [vmem:[%s1 + $0xa0] sm:$0xff]
    %v56 = vld [vmem:[%s1 + $0xa8] sm:$0xff]
    %v57 = vld [vmem:[%s1 + $0xb0] sm:$0xff]
    %v58 = vld [vmem:[%s1 + $0xb8] sm:$0xff]
    %v59 = vld [vmem:[%s1 + $0xc0] sm:$0xff]
    %v60 = vld [vmem:[%s1 + $0xc8] sm:$0xff]
    %v61 = vld [vmem:[%s1 + $0xd0] sm:$0xff]
    %v62 = vld [vmem:[%s1 + $0xd8] sm:$0xff]
    %v63 = vld [vmem:[%s1 + $0xe0] sm:$0xff]
    %v64 = vld [vmem:[%s1 + $0xe8] sm:$0xff]
    %v65 = vld [vmem:[%s1 + $0xf0] sm:$0xff]
    %v66 = vld [vmem:[%s1 + $0xf8] sm:$0xff]
    %v67 = vld [vmem:[%s1 + $0x100] sm:$0xff]
    %v68 = vld [vmem:[%s1 + $0x108] sm:$0xff]
    %v69 = vld [vmem:[%s1 + $0x110] sm:$0xff]
    %v70 = vld [vmem:[%s1 + $0x118] sm:$0xff]
    %v71 = vld [vmem:[%s1 + $0x120] sm:$0xff]
    %v72 = vld [vmem:[%s1 + $0x128] sm:$0xff]
    %v73 = vld [vmem:[%s1 + $0x130] sm:$0xff]
    %v74 = vld [vmem:[%s1 + $0x138] sm:$0xff]
    %v75 = vld [vmem:[%s1 + $0x140] sm:$0xff]
    %v76 = vld [vmem:[%s1 + $0x148] sm:$0xff]
    %v77 = vld [vmem:[%s1 + $0x150] sm:$0xff]
    %v78 = vld [vmem:[%s1 + $0x158] sm:$0xff]
    %v79 = vld [vmem:[%s1 + $0x160] sm:$0xff]
    %v80 = vld [vmem:[%s1 + $0x168] sm:$0xff]
    %v81 = vld [vmem:[%s1 + $0x170] sm:$0xff]
    %v82 = vld [vmem:[%s1 + $0x178] sm:$0xff]
    %v83 = vld [vmem:[%s1 + $0x180] sm:$0xff]
    %v84 = vld [vmem:[%s1 + $0x188] sm:$0xff]
    %v85 = vld [vmem:[%s1 + $0x190] sm:$0xff]
    %v86 = vld [vmem:[%s1 + $0x198] sm:$0xff]
    %v87 = vld [vmem:[%s1 + $0x1a0] sm:$0xff]
    %v88 = vld [vmem:[%s1 + $0x1a8] sm:$0xff]
    %v89 = vld [vmem:[%s1 + $0x1b0] sm:$0xff]
    %v90 = vld [vmem:[%s1 + $0x1b8] sm:$0xff]
    %v91 = vld [vmem:[%s1 + $0x1c0] sm:$0xff]
    %v92 = vld [vmem:[%s1 + $0x1c8] sm:$0xff]
    %v93 = vld [vmem:[%s1 + $0x1d0] sm:$0xff]
    %v94 = vld [vmem:[%s1 + $0x1d8] sm:$0xff]
    %v95 = vld [vmem:[%s1 + $0x1e0] sm:$0xff]
    %v96 = vld [vmem:[%s1 + $0x1e8] sm:$0xff]
    %v97 = vld [vmem:[%s1 + $0x1f0] sm:$0xff]
    %v98 = vld [vmem:[%s1 + $0x1f8] sm:$0xff]
    %v99 = vld [vmem:[%s1 + $0x200] sm:$0xff]
    %v100 = vld [vmem:[%s1 + $0x208] sm:$0xff]
    %v101 = vld [vmem:[%s1 + $0x210] sm:$0xff]
    %v102 = vld [vmem:[%s1 + $0x218] sm:$0xff]
    %v103 = vld [vmem:[%s1 + $0x220] sm:$0xff]
    %v104 = vld [vmem:[%s1 + $0x228] sm:$0xff]
    %v105 = vld [vmem:[%s1 + $0x230] sm:$0xff]
    %v106 = vld [vmem:[%s1 + $0x238] sm:$0xff]
    %v107 = vld [vmem:[%s1 + $0x240] sm:$0xff]
    %v108 = vld [vmem:[%s1 + $0x248] sm:$0xff]
    %v109 = vld [vmem:[%s1 + $0x250] sm:$0xff]
    %v110 = vld [vmem:[%s1 + $0x258] sm:$0xff]
    %v111 = vld [vmem:[%s1 + $0x260] sm:$0xff]
    %v112 = vld [vmem:[%s1 + $0x268] sm:$0xff]
    %v113 = vld [vmem:[%s1 + $0x270] sm:$0xff]
    %v114 = vld [vmem:[%s1 + $0x278] sm:$0xff]
    %v115 = vld [vmem:[%s1 + $0x280] sm:$0xff]
    %v116 = vld [vmem:[%s1 + $0x288] sm:$0xff]
    %v117 = vld [vmem:[%s1 + $0x290] sm:$0xff]
    %v118 = vld [vmem:[%s1 + $0x298] sm:$0xff]
    %v119 = vld [vmem:[%s1 + $0x2a0] sm:$0xff]
    %v120 = vld [vmem:[%s1 + $0x2a8] sm:$0xff]
    %v121 = vld [vmem:[%s1 + $0x2b0] sm:$0xff]
    %v122 = vld [vmem:[%s1 + $0x2b8] sm:$0xff]
    %v123 = vld [vmem:[%s1 + $0x2c0] sm:$0xff]
    %v124 = vld [vmem:[%s1 + $0x2c8] sm:$0xff]
    %v125 = vld [vmem:[%s1 + $0x2d0] sm:$0xff]
    %v126 = vld [vmem:[%s1 + $0x2d8] sm:$0xff]
    %v127 = vld [vmem:[%s1 + $0x2e0] sm:$0xff]
    %v128 = vld [vmem:[%s1 + $0x2e8] sm:$0xff]
    %v129 = vld [vmem:[%s1 + $0x2f0] sm:$0xff]
    %v130 = vld [vmem:[%s1 + $0x2f8] sm:$0xff]
    %v131 = vld [vmem:[%s1 + $0x300] sm:$0xff]
    %v132 = vld [vmem:[%s1 + $0x308] sm:$0xff]
    %v133 = vld [vmem:[%s1 + $0x310] sm:$0xff]
    %v134 = vld [vmem:[%s1 + $0x318] sm:$0xff]
    %v135 = vld [vmem:[%s1 + $0x320] sm:$0xff]
    %v136 = vld [vmem:[%s1 + $0x328] sm:$0xff]
    %v137 = vld [vmem:[%s1 + $0x330] sm:$0xff]
    %v138 = vld [vmem:[%s1 + $0x338] sm:$0xff]
    %v139 = vld [vmem:[%s1 + $0x340] sm:$0xff]
    %v140 = vld [vmem:[%s1 + $0x348] sm:$0xff]
    %v141 = vld [vmem:[%s1 + $0x350] sm:$0xff]
    %v142 = vld [vmem:[%s1 + $0x358] sm:$0xff]
    %v143 = vld [vmem:[%s1 + $0x360] sm:$0xff]
    %v144 = vld [vmem:[%s1 + $0x368] sm:$0xff]
    %v145 = vld [vmem:[%s1 + $0x370] sm:$0xff]
    %v146 = vld [vmem:[%s1 + $0x378] sm:$0xff]
    %v147 = vld [vmem:[%s1 + $0x380] sm:$0xff]
    %v148 = vld [vmem:[%s1 + $0x388] sm:$0xff]
    %v149 = vld [vmem:[%s1 + $0x390] sm:$0xff]
    %v150 = vld [vmem:[%s1 + $0x398] sm:$0xff]
    %v151 = vld [vmem:[%s1 + $0x3a0] sm:$0xff]
    %v152 = vld [vmem:[%s1 + $0x3a8] sm:$0xff]
    %v153 = vld [vmem:[%s1 + $0x3b0] sm:$0xff]
    %v154 = vld [vmem:[%s1 + $0x3b8] sm:$0xff]
    %v155 = vld [vmem:[%s1 + $0x3c0] sm:$0xff]
    %v156 = vld [vmem:[%s1 + $0x3c8] sm:$0xff]
    %v157 = vld [vmem:[%s1 + $0x3d0] sm:$0xff]
    %v158 = vld [vmem:[%s1 + $0x3d8] sm:$0xff]
    %v159 = vld [vmem:[%s1 + $0x3e0] sm:$0xff]
    %v160 = vld [vmem:[%s1 + $0x3e8] sm:$0xff]
    %v161 = vld [vmem:[%s1 + $0x3f0] sm:$0xff]
    %v162 = vld [vmem:[%s1 + $0x3f8] sm:$0xff]
    %v163 = vld [vmem:[%s2] sm:$0xff]
    %v164 = vld [vmem:[%s2 + $0x8] sm:$0xff]
    %v167 = vlaneseq
    %v168 = vshrl.u32 %v167, 7
    %v169 = vsub.s32 0, %v168
    %v170 = vrot.slane %v163, %v169
    %v171 = vlaneseq
    %v172 = vshrl.u32 %v171, 7
    %v173 = vsub.s32 1, %v172
    %v174 = vrot.slane %v163, %v173
    %v175 = vlaneseq
    %v176 = vshrl.u32 %v175, 7
    %v177 = vsub.s32 2, %v176
    %v178 = vrot.slane %v163, %v177
    %v179 = vlaneseq
    %v180 = vshrl.u32 %v179, 7
    %v181 = vsub.s32 3, %v180
    %v182 = vrot.slane %v163, %v181
    %v183 = vlaneseq
    %v184 = vshrl.u32 %v183, 7
    %v185 = vsub.s32 4, %v184
    %v186 = vrot.slane %v163, %v185
    %v187 = vlaneseq
    %v188 = vshrl.u32 %v187, 7
    %v189 = vsub.s32 5, %v188
    %v190 = vrot.slane %v163, %v189
    %v191 = vlaneseq
    %v192 = vshrl.u32 %v191, 7
    %v193 = vsub.s32 6, %v192
    %v194 = vrot.slane %v163, %v193
    %v195 = vlaneseq
    %v196 = vshrl.u32 %v195, 7
    %v197 = vsub.s32 7, %v196
    %v198 = vrot.slane %v163, %v197
    %v199 = vlaneseq
    %v200 = vshrl.u32 %v199, 7
    %v201 = vsub.s32 0, %v200
    %v202 = vrot.slane %v164, %v201
    %v203 = vlaneseq
    %v204 = vshrl.u32 %v203, 7
    %v205 = vsub.s32 1, %v204
    %v206 = vrot.slane %v164, %v205
    %v207 = vlaneseq
    %v208 = vshrl.u32 %v207, 7
    %v209 = vsub.s32 2, %v208
    %v210 = vrot.slane %v164, %v209
    %v211 = vlaneseq
    %v212 = vshrl.u32 %v211, 7
    %v213 = vsub.s32 3, %v212
    %v214 = vrot.slane %v164, %v213
    %v215 = vlaneseq
    %v216 = vshrl.u32 %v215, 7
    %v217 = vsub.s32 4, %v216
    %v218 = vrot.slane %v164, %v217
    %v219 = vlaneseq
    %v220 = vshrl.u32 %v219, 7
    %v221 = vsub.s32 5, %v220
    %v222 = vrot.slane %v164, %v221
    %v223 = vlaneseq
    %v224 = vshrl.u32 %v223, 7
    %v225 = vsub.s32 6, %v224
    %v226 = vrot.slane %v164, %v225
    %v227 = vlaneseq
    %v228 = vshrl.u32 %v227, 7
    %v229 = vsub.s32 7, %v228
    %v230 = vrot.slane %v164, %v229
    %v375 = vunpack.c.l.b16 %v35
    %v376 = vunpack.c.h.b16 %v35
    %v377 = vunpack.c.l.b16 %v36
    %v378 = vunpack.c.h.b16 %v36
    %v379 = vunpack.c.l.b16 %v37
    %v380 = vunpack.c.h.b16 %v37
    %v381 = vunpack.c.l.b16 %v38
    %v382 = vunpack.c.h.b16 %v38
    %v383 = vunpack.c.l.b16 %v39
    %v384 = vunpack.c.h.b16 %v39
    %v385 = vunpack.c.l.b16 %v40
    %v386 = vunpack.c.h.b16 %v40
    %v387 = vunpack.c.l.b16 %v41
    %v388 = vunpack.c.h.b16 %v41
    %v389 = vunpack.c.l.b16 %v42
    %v390 = vunpack.c.h.b16 %v42
    %v391 = vunpack.c.l.b16 %v43
    %v392 = vunpack.c.h.b16 %v43
    %v393 = vunpack.c.l.b16 %v44
    %v394 = vunpack.c.h.b16 %v44
    %v395 = vunpack.c.l.b16 %v45
    %v396 = vunpack.c.h.b16 %v45
    %v397 = vunpack.c.l.b16 %v46
    %v398 = vunpack.c.h.b16 %v46
    %v399 = vunpack.c.l.b16 %v47
    %v400 = vunpack.c.h.b16 %v47
    %v401 = vunpack.c.l.b16 %v48
    %v402 = vunpack.c.h.b16 %v48
    %v403 = vunpack.c.l.b16 %v49
    %v404 = vunpack.c.h.b16 %v49
    %v405 = vunpack.c.l.b16 %v50
    %v406 = vunpack.c.h.b16 %v50
    %v407 = vunpack.c.l.b16 %v51
    %v408 = vunpack.c.h.b16 %v51
    %v409 = vunpack.c.l.b16 %v52
    %v410 = vunpack.c.h.b16 %v52
    %v411 = vunpack.c.l.b16 %v53
    %v412 = vunpack.c.h.b16 %v53
    %v413 = vunpack.c.l.b16 %v54
    %v414 = vunpack.c.h.b16 %v54
    %v415 = vunpack.c.l.b16 %v55
    %v416 = vunpack.c.h.b16 %v55
    %v417 = vunpack.c.l.b16 %v56
    %v418 = vunpack.c.h.b16 %v56
    %v419 = vunpack.c.l.b16 %v57
    %v420 = vunpack.c.h.b16 %v57
    %v421 = vunpack.c.l.b16 %v58
    %v422 = vunpack.c.h.b16 %v58
    %v423 = vunpack.c.l.b16 %v59
    %v424 = vunpack.c.h.b16 %v59
    %v425 = vunpack.c.l.b16 %v60
    %v426 = vunpack.c.h.b16 %v60
    %v427 = vunpack.c.l.b16 %v61
    %v428 = vunpack.c.h.b16 %v61
    %v429 = vunpack.c.l.b16 %v62
    %v430 = vunpack.c.h.b16 %v62
    %v431 = vunpack.c.l.b16 %v63
    %v432 = vunpack.c.h.b16 %v63
    %v433 = vunpack.c.l.b16 %v64
    %v434 = vunpack.c.h.b16 %v64
    %v435 = vunpack.c.l.b16 %v65
    %v436 = vunpack.c.h.b16 %v65
    %v437 = vunpack.c.l.b16 %v66
    %v438 = vunpack.c.h.b16 %v66
    %v439 = vunpack.c.l.b16 %v67
    %v440 = vunpack.c.h.b16 %v67
    %v441 = vunpack.c.l.b16 %v68
    %v442 = vunpack.c.h.b16 %v68
    %v443 = vunpack.c.l.b16 %v69
    %v444 = vunpack.c.h.b16 %v69
    %v445 = vunpack.c.l.b16 %v70
    %v446 = vunpack.c.h.b16 %v70
    %v447 = vunpack.c.l.b16 %v71
    %v448 = vunpack.c.h.b16 %v71
    %v449 = vunpack.c.l.b16 %v72
    %v450 = vunpack.c.h.b16 %v72
    %v451 = vunpack.c.l.b16 %v73
    %v452 = vunpack.c.h.b16 %v73
    %v453 = vunpack.c.l.b16 %v74
    %v454 = vunpack.c.h.b16 %v74
    %v455 = vunpack.c.l.b16 %v75
    %v456 = vunpack.c.h.b16 %v75
    %v457 = vunpack.c.l.b16 %v76
    %v458 = vunpack.c.h.b16 %v76
    %v459 = vunpack.c.l.b16 %v77
    %v460 = vunpack.c.h.b16 %v77
    %v461 = vunpack.c.l.b16 %v78
    %v462 = vunpack.c.h.b16 %v78
    %v463 = vunpack.c.l.b16 %v79
    %v464 = vunpack.c.h.b16 %v79
    %v465 = vunpack.c.l.b16 %v80
    %v466 = vunpack.c.h.b16 %v80
    %v467 = vunpack.c.l.b16 %v81
    %v468 = vunpack.c.h.b16 %v81
    %v469 = vunpack.c.l.b16 %v82
    %v470 = vunpack.c.h.b16 %v82
    %v471 = vunpack.c.l.b16 %v83
    %v472 = vunpack.c.h.b16 %v83
    %v473 = vunpack.c.l.b16 %v84
    %v474 = vunpack.c.h.b16 %v84
    %v475 = vunpack.c.l.b16 %v85
    %v476 = vunpack.c.h.b16 %v85
    %v477 = vunpack.c.l.b16 %v86
    %v478 = vunpack.c.h.b16 %v86
    %v479 = vunpack.c.l.b16 %v87
    %v480 = vunpack.c.h.b16 %v87
    %v481 = vunpack.c.l.b16 %v88
    %v482 = vunpack.c.h.b16 %v88
    %v483 = vunpack.c.l.b16 %v89
    %v484 = vunpack.c.h.b16 %v89
    %v485 = vunpack.c.l.b16 %v90
    %v486 = vunpack.c.h.b16 %v90
    %v487 = vunpack.c.l.b16 %v91
    %v488 = vunpack.c.h.b16 %v91
    %v489 = vunpack.c.l.b16 %v92
    %v490 = vunpack.c.h.b16 %v92
    %v491 = vunpack.c.l.b16 %v93
    %v492 = vunpack.c.h.b16 %v93
    %v493 = vunpack.c.l.b16 %v94
    %v494 = vunpack.c.h.b16 %v94
    %v495 = vunpack.c.l.b16 %v95
    %v496 = vunpack.c.h.b16 %v95
    %v497 = vunpack.c.l.b16 %v96
    %v498 = vunpack.c.h.b16 %v96
    %v499 = vunpack.c.l.b16 %v97
    %v500 = vunpack.c.h.b16 %v97
    %v501 = vunpack.c.l.b16 %v98
    %v502 = vunpack.c.h.b16 %v98
    %v503 = vunpack.c.l.b16 %v99
    %v504 = vunpack.c.h.b16 %v99
    %v505 = vunpack.c.l.b16 %v100
    %v506 = vunpack.c.h.b16 %v100
    %v507 = vunpack.c.l.b16 %v101
    %v508 = vunpack.c.h.b16 %v101
    %v509 = vunpack.c.l.b16 %v102
    %v510 = vunpack.c.h.b16 %v102
    %v511 = vunpack.c.l.b16 %v103
    %v512 = vunpack.c.h.b16 %v103
    %v513 = vunpack.c.l.b16 %v104
    %v514 = vunpack.c.h.b16 %v104
    %v515 = vunpack.c.l.b16 %v105
    %v516 = vunpack.c.h.b16 %v105
    %v517 = vunpack.c.l.b16 %v106
    %v518 = vunpack.c.h.b16 %v106
    %v519 = vunpack.c.l.b16 %v107
    %v520 = vunpack.c.h.b16 %v107
    %v521 = vunpack.c.l.b16 %v108
    %v522 = vunpack.c.h.b16 %v108
    %v523 = vunpack.c.l.b16 %v109
    %v524 = vunpack.c.h.b16 %v109
    %v525 = vunpack.c.l.b16 %v110
    %v526 = vunpack.c.h.b16 %v110
    %v527 = vunpack.c.l.b16 %v111
    %v528 = vunpack.c.h.b16 %v111
    %v529 = vunpack.c.l.b16 %v112
    %v530 = vunpack.c.h.b16 %v112
    %v531 = vunpack.c.l.b16 %v113
    %v532 = vunpack.c.h.b16 %v113
    %v533 = vunpack.c.l.b16 %v114
    %v534 = vunpack.c.h.b16 %v114
    %v535 = vunpack.c.l.b16 %v115
    %v536 = vunpack.c.h.b16 %v115
    %v537 = vunpack.c.l.b16 %v116
    %v538 = vunpack.c.h.b16 %v116
    %v539 = vunpack.c.l.b16 %v117
    %v540 = vunpack.c.h.b16 %v117
    %v541 = vunpack.c.l.b16 %v118
    %v542 = vunpack.c.h.b16 %v118
    %v543 = vunpack.c.l.b16 %v119
    %v544 = vunpack.c.h.b16 %v119
    %v545 = vunpack.c.l.b16 %v120
    %v546 = vunpack.c.h.b16 %v120
    %v547 = vunpack.c.l.b16 %v121
    %v548 = vunpack.c.h.b16 %v121
    %v549 = vunpack.c.l.b16 %v122
    %v550 = vunpack.c.h.b16 %v122
    %v551 = vunpack.c.l.b16 %v123
    %v552 = vunpack.c.h.b16 %v123
    %v553 = vunpack.c.l.b16 %v124
    %v554 = vunpack.c.h.b16 %v124
    %v555 = vunpack.c.l.b16 %v125
    %v556 = vunpack.c.h.b16 %v125
    %v557 = vunpack.c.l.b16 %v126
    %v558 = vunpack.c.h.b16 %v126
    %v559 = vunpack.c.l.b16 %v127
    %v560 = vunpack.c.h.b16 %v127
    %v561 = vunpack.c.l.b16 %v128
    %v562 = vunpack.c.h.b16 %v128
    %v563 = vunpack.c.l.b16 %v129
    %v564 = vunpack.c.h.b16 %v129
    %v565 = vunpack.c.l.b16 %v130
    %v566 = vunpack.c.h.b16 %v130
    %v567 = vunpack.c.l.b16 %v131
    %v568 = vunpack.c.h.b16 %v131
    %v569 = vunpack.c.l.b16 %v132
    %v570 = vunpack.c.h.b16 %v132
    %v571 = vunpack.c.l.b16 %v133
    %v572 = vunpack.c.h.b16 %v133
    %v573 = vunpack.c.l.b16 %v134
    %v574 = vunpack.c.h.b16 %v134
    %v575 = vunpack.c.l.b16 %v135
    %v576 = vunpack.c.h.b16 %v135
    %v577 = vunpack.c.l.b16 %v136
    %v578 = vunpack.c.h.b16 %v136
    %v579 = vunpack.c.l.b16 %v137
    %v580 = vunpack.c.h.b16 %v137
    %v581 = vunpack.c.l.b16 %v138
    %v582 = vunpack.c.h.b16 %v138
    %v583 = vunpack.c.l.b16 %v139
    %v584 = vunpack.c.h.b16 %v139
    %v585 = vunpack.c.l.b16 %v140
    %v586 = vunpack.c.h.b16 %v140
    %v587 = vunpack.c.l.b16 %v141
    %v588 = vunpack.c.h.b16 %v141
    %v589 = vunpack.c.l.b16 %v142
    %v590 = vunpack.c.h.b16 %v142
    %v591 = vunpack.c.l.b16 %v143
    %v592 = vunpack.c.h.b16 %v143
    %v593 = vunpack.c.l.b16 %v144
    %v594 = vunpack.c.h.b16 %v144
    %v595 = vunpack.c.l.b16 %v145
    %v596 = vunpack.c.h.b16 %v145
    %v597 = vunpack.c.l.b16 %v146
    %v598 = vunpack.c.h.b16 %v146
    %v599 = vunpack.c.l.b16 %v147
    %v600 = vunpack.c.h.b16 %v147
    %v601 = vunpack.c.l.b16 %v148
    %v602 = vunpack.c.h.b16 %v148
    %v603 = vunpack.c.l.b16 %v149
    %v604 = vunpack.c.h.b16 %v149
    %v605 = vunpack.c.l.b16 %v150
    %v606 = vunpack.c.h.b16 %v150
    %v607 = vunpack.c.l.b16 %v151
    %v608 = vunpack.c.h.b16 %v151
    %v609 = vunpack.c.l.b16 %v152
    %v610 = vunpack.c.h.b16 %v152
    %v611 = vunpack.c.l.b16 %v153
    %v612 = vunpack.c.h.b16 %v153
    %v613 = vunpack.c.l.b16 %v154
    %v614 = vunpack.c.h.b16 %v154
    %v615 = vunpack.c.l.b16 %v155
    %v616 = vunpack.c.h.b16 %v155
    %v617 = vunpack.c.l.b16 %v156
    %v618 = vunpack.c.h.b16 %v156
    %v619 = vunpack.c.l.b16 %v157
    %v620 = vunpack.c.h.b16 %v157
    %v621 = vunpack.c.l.b16 %v158
    %v622 = vunpack.c.h.b16 %v158
    %v623 = vunpack.c.l.b16 %v159
    %v624 = vunpack.c.h.b16 %v159
    %v625 = vunpack.c.l.b16 %v160
    %v626 = vunpack.c.h.b16 %v160
    %v627 = vunpack.c.l.b16 %v161
    %v628 = vunpack.c.h.b16 %v161
    %v629 = vunpack.c.l.b16 %v162
    %v630 = vunpack.c.h.b16 %v162
    %v631 = vpack.c.b16 %v391, %v375
    %v632 = vpack.c.b16 %v392, %v376
    %v633 = vpack.c.b16 %v393, %v377
    %v634 = vpack.c.b16 %v394, %v378
    %v635 = vpack.c.b16 %v395, %v379
    %v636 = vpack.c.b16 %v396, %v380
    %v637 = vpack.c.b16 %v397, %v381
    %v638 = vpack.c.b16 %v398, %v382
    %v639 = vpack.c.b16 %v399, %v383
    %v640 = vpack.c.b16 %v400, %v384
    %v641 = vpack.c.b16 %v401, %v385
    %v642 = vpack.c.b16 %v402, %v386
    %v643 = vpack.c.b16 %v403, %v387
    %v644 = vpack.c.b16 %v404, %v388
    %v645 = vpack.c.b16 %v405, %v389
    %v646 = vpack.c.b16 %v406, %v390
    %v647 = vpack.c.b16 %v423, %v407
    %v648 = vpack.c.b16 %v424, %v408
    %v649 = vpack.c.b16 %v425, %v409
    %v650 = vpack.c.b16 %v426, %v410
    %v651 = vpack.c.b16 %v427, %v411
    %v652 = vpack.c.b16 %v428, %v412
    %v653 = vpack.c.b16 %v429, %v413
    %v654 = vpack.c.b16 %v430, %v414
    %v655 = vpack.c.b16 %v431, %v415
    %v656 = vpack.c.b16 %v432, %v416
    %v657 = vpack.c.b16 %v433, %v417
    %v658 = vpack.c.b16 %v434, %v418
    %v659 = vpack.c.b16 %v435, %v419
    %v660 = vpack.c.b16 %v436, %v420
    %v661 = vpack.c.b16 %v437, %v421
    %v662 = vpack.c.b16 %v438, %v422
    %v663 = vpack.c.b16 %v455, %v439
    %v664 = vpack.c.b16 %v456, %v440
    %v665 = vpack.c.b16 %v457, %v441
    %v666 = vpack.c.b16 %v458, %v442
    %v667 = vpack.c.b16 %v459, %v443
    %v668 = vpack.c.b16 %v460, %v444
    %v669 = vpack.c.b16 %v461, %v445
    %v670 = vpack.c.b16 %v462, %v446
    %v671 = vpack.c.b16 %v463, %v447
    %v672 = vpack.c.b16 %v464, %v448
    %v673 = vpack.c.b16 %v465, %v449
    %v674 = vpack.c.b16 %v466, %v450
    %v675 = vpack.c.b16 %v467, %v451
    %v676 = vpack.c.b16 %v468, %v452
    %v677 = vpack.c.b16 %v469, %v453
    %v678 = vpack.c.b16 %v470, %v454
    %v679 = vpack.c.b16 %v487, %v471
    %v680 = vpack.c.b16 %v488, %v472
    %v681 = vpack.c.b16 %v489, %v473
    %v682 = vpack.c.b16 %v490, %v474
    %v683 = vpack.c.b16 %v491, %v475
    %v684 = vpack.c.b16 %v492, %v476
    %v685 = vpack.c.b16 %v493, %v477
    %v686 = vpack.c.b16 %v494, %v478
    %v687 = vpack.c.b16 %v495, %v479
    %v688 = vpack.c.b16 %v496, %v480
    %v689 = vpack.c.b16 %v497, %v481
    %v690 = vpack.c.b16 %v498, %v482
    %v691 = vpack.c.b16 %v499, %v483
    %v692 = vpack.c.b16 %v500, %v484
    %v693 = vpack.c.b16 %v501, %v485
    %v694 = vpack.c.b16 %v502, %v486
    %v695 = vpack.c.b16 %v519, %v503
    %v696 = vpack.c.b16 %v520, %v504
    %v697 = vpack.c.b16 %v521, %v505
    %v698 = vpack.c.b16 %v522, %v506
    %v699 = vpack.c.b16 %v523, %v507
    %v700 = vpack.c.b16 %v524, %v508
    %v701 = vpack.c.b16 %v525, %v509
    %v702 = vpack.c.b16 %v526, %v510
    %v703 = vpack.c.b16 %v527, %v511
    %v704 = vpack.c.b16 %v528, %v512
    %v705 = vpack.c.b16 %v529, %v513
    %v706 = vpack.c.b16 %v530, %v514
    %v707 = vpack.c.b16 %v531, %v515
    %v708 = vpack.c.b16 %v532, %v516
    %v709 = vpack.c.b16 %v533, %v517
    %v710 = vpack.c.b16 %v534, %v518
    %v711 = vpack.c.b16 %v551, %v535
    %v712 = vpack.c.b16 %v552, %v536
    %v713 = vpack.c.b16 %v553, %v537
    %v714 = vpack.c.b16 %v554, %v538
    %v715 = vpack.c.b16 %v555, %v539
    %v716 = vpack.c.b16 %v556, %v540
    %v717 = vpack.c.b16 %v557, %v541
    %v718 = vpack.c.b16 %v558, %v542
    %v719 = vpack.c.b16 %v559, %v543
    %v720 = vpack.c.b16 %v560, %v544
    %v721 = vpack.c.b16 %v561, %v545
    %v722 = vpack.c.b16 %v562, %v546
    %v723 = vpack.c.b16 %v563, %v547
    %v724 = vpack.c.b16 %v564, %v548
    %v725 = vpack.c.b16 %v565, %v549
    %v726 = vpack.c.b16 %v566, %v550
    %v727 = vpack.c.b16 %v583, %v567
    %v728 = vpack.c.b16 %v584, %v568
    %v729 = vpack.c.b16 %v585, %v569
    %v730 = vpack.c.b16 %v586, %v570
    %v731 = vpack.c.b16 %v587, %v571
    %v732 = vpack.c.b16 %v588, %v572
    %v733 = vpack.c.b16 %v589, %v573
    %v734 = vpack.c.b16 %v590, %v574
    %v735 = vpack.c.b16 %v591, %v575
    %v736 = vpack.c.b16 %v592, %v576
    %v737 = vpack.c.b16 %v593, %v577
    %v738 = vpack.c.b16 %v594, %v578
    %v739 = vpack.c.b16 %v595, %v579
    %v740 = vpack.c.b16 %v596, %v580
    %v741 = vpack.c.b16 %v597, %v581
    %v742 = vpack.c.b16 %v598, %v582
    %v743 = vpack.c.b16 %v615, %v599
    %v744 = vpack.c.b16 %v616, %v600
    %v745 = vpack.c.b16 %v617, %v601
    %v746 = vpack.c.b16 %v618, %v602
    %v747 = vpack.c.b16 %v619, %v603
    %v748 = vpack.c.b16 %v620, %v604
    %v749 = vpack.c.b16 %v621, %v605
    %v750 = vpack.c.b16 %v622, %v606
    %v751 = vpack.c.b16 %v623, %v607
    %v752 = vpack.c.b16 %v624, %v608
    %v753 = vpack.c.b16 %v625, %v609
    %v754 = vpack.c.b16 %v626, %v610
    %v755 = vpack.c.b16 %v627, %v611
    %v756 = vpack.c.b16 %v628, %v612
    %v757 = vpack.c.b16 %v629, %v613
    %v758 = vpack.c.b16 %v630, %v614
    %887 = vmatprep.subr.bf16.mxu0 %v632
    %888 = vmatpush1.bf16.msra.mxu0 %v631
    %889 = vmatprep.subr.bf16.mxu0 %v648
    %890 = vmatpush1.bf16.msra.mxu0 %v647
    %891 = vmatprep.subr.bf16.mxu0 %v664
    %892 = vmatpush1.bf16.msra.mxu0 %v663
    %893 = vmatprep.subr.bf16.mxu0 %v680
    %894 = vmatpush1.bf16.msra.mxu0 %v679
    %895 = vmatprep.subr.bf16.mxu0 %v696
    %896 = vmatpush1.bf16.msra.mxu0 %v695
    %897 = vmatprep.subr.bf16.mxu0 %v712
    %898 = vmatpush1.bf16.msra.mxu0 %v711
    %899 = vmatprep.subr.bf16.mxu0 %v728
    %900 = vmatpush1.bf16.msra.mxu0 %v727
    %901 = vmatprep.subr.bf16.mxu0 %v744
    %902 = vmatpush1.bf16.msra.mxu0 %v743
    %903 = vmatprep.subr.bf16.mxu0 0
    %904 = vmatpush1.bf16.msra.mxu0 0
    %905 = vmatprep.subr.bf16.mxu0 0
    %906 = vmatpush1.bf16.msra.mxu0 0
    %907 = vmatprep.subr.bf16.mxu0 0
    %908 = vmatpush1.bf16.msra.mxu0 0
    %909 = vmatprep.subr.bf16.mxu0 0
    %910 = vmatpush1.bf16.msra.mxu0 0
    %911 = vmatprep.subr.bf16.mxu0 0
    %912 = vmatpush1.bf16.msra.mxu0 0
    %913 = vmatprep.subr.bf16.mxu0 0
    %914 = vmatpush1.bf16.msra.mxu0 0
    %915 = vmatprep.subr.bf16.mxu0 0
    %916 = vmatpush1.bf16.msra.mxu0 0
    %917 = vmatprep.subr.bf16.mxu0 0
    %918 = vmatpush1.bf16.msra.mxu0 0
    %919 = vmatprep.mubr.bf16.mxu0 0
    %920 = vmatmul.mubr.bf16.gmra.mrb[0].mxu0 %v34
    %v921 = vpop.f32.mrb[0].mxu0
    %v922 = vadd.f32 %v170, %v921
    %v923 = vpop.f32.mrb[0].mxu0
    %v924 = vadd.f32 %v174, %v923
    %v925 = vpop.f32.mrb[0].mxu0
    %v926 = vpop.f32.mrb[0].mxu0
    %927 = vdwg.mxu0
    %928 = vmatprep.subr.bf16.mxu0 %v634
    %929 = vmatpush1.bf16.msra.mxu0 %v633
    %930 = vmatprep.subr.bf16.mxu0 %v650
    %931 = vmatpush1.bf16.msra.mxu0 %v649
    %932 = vmatprep.subr.bf16.mxu0 %v666
    %933 = vmatpush1.bf16.msra.mxu0 %v665
    %934 = vmatprep.subr.bf16.mxu0 %v682
    %935 = vmatpush1.bf16.msra.mxu0 %v681
    %936 = vmatprep.subr.bf16.mxu0 %v698
    %937 = vmatpush1.bf16.msra.mxu0 %v697
    %938 = vmatprep.subr.bf16.mxu0 %v714
    %939 = vmatpush1.bf16.msra.mxu0 %v713
    %940 = vmatprep.subr.bf16.mxu0 %v730
    %941 = vmatpush1.bf16.msra.mxu0 %v729
    %942 = vmatprep.subr.bf16.mxu0 %v746
    %943 = vmatpush1.bf16.msra.mxu0 %v745
    %944 = vmatprep.subr.bf16.mxu0 0
    %945 = vmatpush1.bf16.msra.mxu0 0
    %946 = vmatprep.subr.bf16.mxu0 0
    %947 = vmatpush1.bf16.msra.mxu0 0
    %948 = vmatprep.subr.bf16.mxu0 0
    %949 = vmatpush1.bf16.msra.mxu0 0
    %950 = vmatprep.subr.bf16.mxu0 0
    %951 = vmatpush1.bf16.msra.mxu0 0
    %952 = vmatprep.subr.bf16.mxu0 0
    %953 = vmatpush1.bf16.msra.mxu0 0
    %954 = vmatprep.subr.bf16.mxu0 0
    %955 = vmatpush1.bf16.msra.mxu0 0
    %956 = vmatprep.subr.bf16.mxu0 0
    %957 = vmatpush1.bf16.msra.mxu0 0
    %958 = vmatprep.subr.bf16.mxu0 0
    %959 = vmatpush1.bf16.msra.mxu0 0
    %960 = vmatprep.mubr.bf16.mxu0 0
    %961 = vmatmul.mubr.bf16.gmra.mrb[0].mxu0 %v34
    %v962 = vpop.f32.mrb[0].mxu0
    %v963 = vadd.f32 %v178, %v962
    %v964 = vpop.f32.mrb[0].mxu0
    %v965 = vadd.f32 %v182, %v964
    %v966 = vpop.f32.mrb[0].mxu0
    %v967 = vpop.f32.mrb[0].mxu0
    %968 = vdwg.mxu0
    %969 = vmatprep.subr.bf16.mxu0 %v636
    %970 = vmatpush1.bf16.msra.mxu0 %v635
    %971 = vmatprep.subr.bf16.mxu0 %v652
    %972 = vmatpush1.bf16.msra.mxu0 %v651
    %973 = vmatprep.subr.bf16.mxu0 %v668
    %974 = vmatpush1.bf16.msra.mxu0 %v667
    %975 = vmatprep.subr.bf16.mxu0 %v684
    %976 = vmatpush1.bf16.msra.mxu0 %v683
    %977 = vmatprep.subr.bf16.mxu0 %v700
    %978 = vmatpush1.bf16.msra.mxu0 %v699
    %979 = vmatprep.subr.bf16.mxu0 %v716
    %980 = vmatpush1.bf16.msra.mxu0 %v715
    %981 = vmatprep.subr.bf16.mxu0 %v732
    %982 = vmatpush1.bf16.msra.mxu0 %v731
    %983 = vmatprep.subr.bf16.mxu0 %v748
    %984 = vmatpush1.bf16.msra.mxu0 %v747
    %985 = vmatprep.subr.bf16.mxu0 0
    %986 = vmatpush1.bf16.msra.mxu0 0
    %987 = vmatprep.subr.bf16.mxu0 0
    %988 = vmatpush1.bf16.msra.mxu0 0
    %989 = vmatprep.subr.bf16.mxu0 0
    %990 = vmatpush1.bf16.msra.mxu0 0
    %991 = vmatprep.subr.bf16.mxu0 0
    %992 = vmatpush1.bf16.msra.mxu0 0
    %993 = vmatprep.subr.bf16.mxu0 0
    %994 = vmatpush1.bf16.msra.mxu0 0
    %995 = vmatprep.subr.bf16.mxu0 0
    %996 = vmatpush1.bf16.msra.mxu0 0
    %997 = vmatprep.subr.bf16.mxu0 0
    %998 = vmatpush1.bf16.msra.mxu0 0
    %999 = vmatprep.subr.bf16.mxu0 0
    %1000 = vmatpush1.bf16.msra.mxu0 0
    %1001 = vmatprep.mubr.bf16.mxu0 0
    %1002 = vmatmul.mubr.bf16.gmra.mrb[0].mxu0 %v34
    %v1003 = vpop.f32.mrb[0].mxu0
    %v1004 = vadd.f32 %v186, %v1003
    %v1005 = vpop.f32.mrb[0].mxu0
    %v1006 = vadd.f32 %v190, %v1005
    %v1007 = vpop.f32.mrb[0].mxu0
    %v1008 = vpop.f32.mrb[0].mxu0
    %1009 = vdwg.mxu0
    %1010 = vmatprep.subr.bf16.mxu0 %v638
    %1011 = vmatpush1.bf16.msra.mxu0 %v637
    %1012 = vmatprep.subr.bf16.mxu0 %v654
    %1013 = vmatpush1.bf16.msra.mxu0 %v653
    %1014 = vmatprep.subr.bf16.mxu0 %v670
    %1015 = vmatpush1.bf16.msra.mxu0 %v669
    %1016 = vmatprep.subr.bf16.mxu0 %v686
    %1017 = vmatpush1.bf16.msra.mxu0 %v685
    %1018 = vmatprep.subr.bf16.mxu0 %v702
    %1019 = vmatpush1.bf16.msra.mxu0 %v701
    %1020 = vmatprep.subr.bf16.mxu0 %v718
    %1021 = vmatpush1.bf16.msra.mxu0 %v717
    %1022 = vmatprep.subr.bf16.mxu0 %v734
    %1023 = vmatpush1.bf16.msra.mxu0 %v733
    %1024 = vmatprep.subr.bf16.mxu0 %v750
    %1025 = vmatpush1.bf16.msra.mxu0 %v749
    %1026 = vmatprep.subr.bf16.mxu0 0
    %1027 = vmatpush1.bf16.msra.mxu0 0
    %1028 = vmatprep.subr.bf16.mxu0 0
    %1029 = vmatpush1.bf16.msra.mxu0 0
    %1030 = vmatprep.subr.bf16.mxu0 0
    %1031 = vmatpush1.bf16.msra.mxu0 0
    %1032 = vmatprep.subr.bf16.mxu0 0
    %1033 = vmatpush1.bf16.msra.mxu0 0
    %1034 = vmatprep.subr.bf16.mxu0 0
    %1035 = vmatpush1.bf16.msra.mxu0 0
    %1036 = vmatprep.subr.bf16.mxu0 0
    %1037 = vmatpush1.bf16.msra.mxu0 0
    %1038 = vmatprep.subr.bf16.mxu0 0
    %1039 = vmatpush1.bf16.msra.mxu0 0
    %1040 = vmatprep.subr.bf16.mxu0 0
    %1041 = vmatpush1.bf16.msra.mxu0 0
    %1042 = vmatprep.mubr.bf16.mxu0 0
    %1043 = vmatmul.mubr.bf16.gmra.mrb[0].mxu0 %v34
    %v1044 = vpop.f32.mrb[0].mxu0
    %v1045 = vadd.f32 %v194, %v1044
    %v1046 = vpop.f32.mrb[0].mxu0
    %v1047 = vadd.f32 %v198, %v1046
    %v1048 = vpop.f32.mrb[0].mxu0
    %v1049 = vpop.f32.mrb[0].mxu0
    %1050 = vdwg.mxu0
    %1051 = vmatprep.subr.bf16.mxu0 %v640
    %1052 = vmatpush1.bf16.msra.mxu0 %v639
    %1053 = vmatprep.subr.bf16.mxu0 %v656
    %1054 = vmatpush1.bf16.msra.mxu0 %v655
    %1055 = vmatprep.subr.bf16.mxu0 %v672
    %1056 = vmatpush1.bf16.msra.mxu0 %v671
    %1057 = vmatprep.subr.bf16.mxu0 %v688
    %1058 = vmatpush1.bf16.msra.mxu0 %v687
    %1059 = vmatprep.subr.bf16.mxu0 %v704
    %1060 = vmatpush1.bf16.msra.mxu0 %v703
    %1061 = vmatprep.subr.bf16.mxu0 %v720
    %1062 = vmatpush1.bf16.msra.mxu0 %v719
    %1063 = vmatprep.subr.bf16.mxu0 %v736
    %1064 = vmatpush1.bf16.msra.mxu0 %v735
    %1065 = vmatprep.subr.bf16.mxu0 %v752
    %1066 = vmatpush1.bf16.msra.mxu0 %v751
    %1067 = vmatprep.subr.bf16.mxu0 0
    %1068 = vmatpush1.bf16.msra.mxu0 0
    %1069 = vmatprep.subr.bf16.mxu0 0
    %1070 = vmatpush1.bf16.msra.mxu0 0
    %1071 = vmatprep.subr.bf16.mxu0 0
    %1072 = vmatpush1.bf16.msra.mxu0 0
    %1073 = vmatprep.subr.bf16.mxu0 0
    %1074 = vmatpush1.bf16.msra.mxu0 0
    %1075 = vmatprep.subr.bf16.mxu0 0
    %1076 = vmatpush1.bf16.msra.mxu0 0
    %1077 = vmatprep.subr.bf16.mxu0 0
    %1078 = vmatpush1.bf16.msra.mxu0 0
    %1079 = vmatprep.subr.bf16.mxu0 0
    %1080 = vmatpush1.bf16.msra.mxu0 0
    %1081 = vmatprep.subr.bf16.mxu0 0
    %1082 = vmatpush1.bf16.msra.mxu0 0
    %1083 = vmatprep.mubr.bf16.mxu0 0
    %1084 = vmatmul.mubr.bf16.gmra.mrb[0].mxu0 %v34
    %v1085 = vpop.f32.mrb[0].mxu0
    %v1086 = vadd.f32 %v202, %v1085
    %v1087 = vpop.f32.mrb[0].mxu0
    %v1088 = vadd.f32 %v206, %v1087
    %v1089 = vpop.f32.mrb[0].mxu0
    %v1090 = vpop.f32.mrb[0].mxu0
    %1091 = vdwg.mxu0
    %1092 = vmatprep.subr.bf16.mxu0 %v642
    %1093 = vmatpush1.bf16.msra.mxu0 %v641
    %1094 = vmatprep.subr.bf16.mxu0 %v658
    %1095 = vmatpush1.bf16.msra.mxu0 %v657
    %1096 = vmatprep.subr.bf16.mxu0 %v674
    %1097 = vmatpush1.bf16.msra.mxu0 %v673
    %1098 = vmatprep.subr.bf16.mxu0 %v690
    %1099 = vmatpush1.bf16.msra.mxu0 %v689
    %1100 = vmatprep.subr.bf16.mxu0 %v706
    %1101 = vmatpush1.bf16.msra.mxu0 %v705
    %1102 = vmatprep.subr.bf16.mxu0 %v722
    %1103 = vmatpush1.bf16.msra.mxu0 %v721
    %1104 = vmatprep.subr.bf16.mxu0 %v738
    %1105 = vmatpush1.bf16.msra.mxu0 %v737
    %1106 = vmatprep.subr.bf16.mxu0 %v754
    %1107 = vmatpush1.bf16.msra.mxu0 %v753
    %1108 = vmatprep.subr.bf16.mxu0 0
    %1109 = vmatpush1.bf16.msra.mxu0 0
    %1110 = vmatprep.subr.bf16.mxu0 0
    %1111 = vmatpush1.bf16.msra.mxu0 0
    %1112 = vmatprep.subr.bf16.mxu0 0
    %1113 = vmatpush1.bf16.msra.mxu0 0
    %1114 = vmatprep.subr.bf16.mxu0 0
    %1115 = vmatpush1.bf16.msra.mxu0 0
    %1116 = vmatprep.subr.bf16.mxu0 0
    %1117 = vmatpush1.bf16.msra.mxu0 0
    %1118 = vmatprep.subr.bf16.mxu0 0
    %1119 = vmatpush1.bf16.msra.mxu0 0
    %1120 = vmatprep.subr.bf16.mxu0 0
    %1121 = vmatpush1.bf16.msra.mxu0 0
    %1122 = vmatprep.subr.bf16.mxu0 0
    %1123 = vmatpush1.bf16.msra.mxu0 0
    %1124 = vmatprep.mubr.bf16.mxu0 0
    %1125 = vmatmul.mubr.bf16.gmra.mrb[0].mxu0 %v34
    %v1126 = vpop.f32.mrb[0].mxu0
    %v1127 = vadd.f32 %v210, %v1126
    %v1128 = vpop.f32.mrb[0].mxu0
    %v1129 = vadd.f32 %v214, %v1128
    %v1130 = vpop.f32.mrb[0].mxu0
    %v1131 = vpop.f32.mrb[0].mxu0
    %1132 = vdwg.mxu0
    %1133 = vmatprep.subr.bf16.mxu0 %v644
    %1134 = vmatpush1.bf16.msra.mxu0 %v643
    %1135 = vmatprep.subr.bf16.mxu0 %v660
    %1136 = vmatpush1.bf16.msra.mxu0 %v659
    %1137 = vmatprep.subr.bf16.mxu0 %v676
    %1138 = vmatpush1.bf16.msra.mxu0 %v675
    %1139 = vmatprep.subr.bf16.mxu0 %v692
    %1140 = vmatpush1.bf16.msra.mxu0 %v691
    %1141 = vmatprep.subr.bf16.mxu0 %v708
    %1142 = vmatpush1.bf16.msra.mxu0 %v707
    %1143 = vmatprep.subr.bf16.mxu0 %v724
    %1144 = vmatpush1.bf16.msra.mxu0 %v723
    %1145 = vmatprep.subr.bf16.mxu0 %v740
    %1146 = vmatpush1.bf16.msra.mxu0 %v739
    %1147 = vmatprep.subr.bf16.mxu0 %v756
    %1148 = vmatpush1.bf16.msra.mxu0 %v755
    %1149 = vmatprep.subr.bf16.mxu0 0
    %1150 = vmatpush1.bf16.msra.mxu0 0
    %1151 = vmatprep.subr.bf16.mxu0 0
    %1152 = vmatpush1.bf16.msra.mxu0 0
    %1153 = vmatprep.subr.bf16.mxu0 0
    %1154 = vmatpush1.bf16.msra.mxu0 0
    %1155 = vmatprep.subr.bf16.mxu0 0
    %1156 = vmatpush1.bf16.msra.mxu0 0
    %1157 = vmatprep.subr.bf16.mxu0 0
    %1158 = vmatpush1.bf16.msra.mxu0 0
    %1159 = vmatprep.subr.bf16.mxu0 0
    %1160 = vmatpush1.bf16.msra.mxu0 0
    %1161 = vmatprep.subr.bf16.mxu0 0
    %1162 = vmatpush1.bf16.msra.mxu0 0
    %1163 = vmatprep.subr.bf16.mxu0 0
    %1164 = vmatpush1.bf16.msra.mxu0 0
    %1165 = vmatprep.mubr.bf16.mxu0 0
    %1166 = vmatmul.mubr.bf16.gmra.mrb[0].mxu0 %v34
    %v1167 = vpop.f32.mrb[0].mxu0
    %v1168 = vadd.f32 %v218, %v1167
    %v1169 = vpop.f32.mrb[0].mxu0
    %v1170 = vadd.f32 %v222, %v1169
    %v1171 = vpop.f32.mrb[0].mxu0
    %v1172 = vpop.f32.mrb[0].mxu0
    %1173 = vdwg.mxu0
    %1174 = vmatprep.subr.bf16.mxu0 %v646
    %1175 = vmatpush1.bf16.msra.mxu0 %v645
    %1176 = vmatprep.subr.bf16.mxu0 %v662
    %1177 = vmatpush1.bf16.msra.mxu0 %v661
    %1178 = vmatprep.subr.bf16.mxu0 %v678
    %1179 = vmatpush1.bf16.msra.mxu0 %v677
    %1180 = vmatprep.subr.bf16.mxu0 %v694
    %1181 = vmatpush1.bf16.msra.mxu0 %v693
    %1182 = vmatprep.subr.bf16.mxu0 %v710
    %1183 = vmatpush1.bf16.msra.mxu0 %v709
    %1184 = vmatprep.subr.bf16.mxu0 %v726
    %1185 = vmatpush1.bf16.msra.mxu0 %v725
    %1186 = vmatprep.subr.bf16.mxu0 %v742
    %1187 = vmatpush1.bf16.msra.mxu0 %v741
    %1188 = vmatprep.subr.bf16.mxu0 %v758
    %1189 = vmatpush1.bf16.msra.mxu0 %v757
    %1190 = vmatprep.subr.bf16.mxu0 0
    %1191 = vmatpush1.bf16.msra.mxu0 0
    %1192 = vmatprep.subr.bf16.mxu0 0
    %1193 = vmatpush1.bf16.msra.mxu0 0
    %1194 = vmatprep.subr.bf16.mxu0 0
    %1195 = vmatpush1.bf16.msra.mxu0 0
    %1196 = vmatprep.subr.bf16.mxu0 0
    %1197 = vmatpush1.bf16.msra.mxu0 0
    %1198 = vmatprep.subr.bf16.mxu0 0
    %1199 = vmatpush1.bf16.msra.mxu0 0
    %1200 = vmatprep.subr.bf16.mxu0 0
    %1201 = vmatpush1.bf16.msra.mxu0 0
    %1202 = vmatprep.subr.bf16.mxu0 0
    %1203 = vmatpush1.bf16.msra.mxu0 0
    %1204 = vmatprep.subr.bf16.mxu0 0
    %1205 = vmatpush1.bf16.msra.mxu0 0
    %1206 = vmatprep.mubr.bf16.mxu0 0
    %1207 = vmatmul.mubr.bf16.gmra.mrb[0].mxu0 %v34
    %v1208 = vpop.f32.mrb[0].mxu0
    %v1209 = vadd.f32 %v226, %v1208
    %v1210 = vpop.f32.mrb[0].mxu0
    %v1211 = vadd.f32 %v230, %v1210
    %v1212 = vpop.f32.mrb[0].mxu0
    %v1213 = vpop.f32.mrb[0].mxu0
    %1214 = vdwg.mxu0
    %v1215 = vmax.f32 %v922, 0.0
    %v1216 = vmax.f32 %v924, 0.0
    %v1217 = vmax.f32 %v963, 0.0
    %v1218 = vmax.f32 %v965, 0.0
    %v1219 = vmax.f32 %v1004, 0.0
    %v1220 = vmax.f32 %v1006, 0.0
    %v1221 = vmax.f32 %v1045, 0.0
    %v1222 = vmax.f32 %v1047, 0.0
    %v1223 = vmax.f32 %v1086, 0.0
    %v1224 = vmax.f32 %v1088, 0.0
    %v1225 = vmax.f32 %v1127, 0.0
    %v1226 = vmax.f32 %v1129, 0.0
    %v1227 = vmax.f32 %v1168, 0.0
    %v1228 = vmax.f32 %v1170, 0.0
    %v1229 = vmax.f32 %v1209, 0.0
    %v1230 = vmax.f32 %v1211, 0.0
    %v1231 = vpack.c.bf16 %v1215, %v1215
    %v1232 = vpack.c.bf16 %v1216, %v1216
    %v1233 = vpack.c.bf16 %v1217, %v1217
    %v1234 = vpack.c.bf16 %v1218, %v1218
    %v1235 = vpack.c.bf16 %v1219, %v1219
    %v1236 = vpack.c.bf16 %v1220, %v1220
    %v1237 = vpack.c.bf16 %v1221, %v1221
    %v1238 = vpack.c.bf16 %v1222, %v1222
    %v1239 = vpack.c.bf16 %v1223, %v1223
    %v1240 = vpack.c.bf16 %v1224, %v1224
    %v1241 = vpack.c.bf16 %v1225, %v1225
    %v1242 = vpack.c.bf16 %v1226, %v1226
    %v1243 = vpack.c.bf16 %v1227, %v1227
    %v1244 = vpack.c.bf16 %v1228, %v1228
    %v1245 = vpack.c.bf16 %v1229, %v1229
    %v1246 = vpack.c.bf16 %v1230, %v1230
    %v1247 = vld [vmem:[%s3] sm:$0xff]
    %v1248 = vld [vmem:[%s3 + $0x8] sm:$0xff]
    %v1249 = vld [vmem:[%s3 + $0x10] sm:$0xff]
    %v1250 = vld [vmem:[%s3 + $0x18] sm:$0xff]
    %v1251 = vld [vmem:[%s3 + $0x20] sm:$0xff]
    %v1252 = vld [vmem:[%s3 + $0x28] sm:$0xff]
    %v1253 = vld [vmem:[%s3 + $0x30] sm:$0xff]
    %v1254 = vld [vmem:[%s3 + $0x38] sm:$0xff]
    %v1255 = vld [vmem:[%s3 + $0x40] sm:$0xff]
    %v1256 = vld [vmem:[%s3 + $0x48] sm:$0xff]
    %v1257 = vld [vmem:[%s3 + $0x50] sm:$0xff]
    %v1258 = vld [vmem:[%s3 + $0x58] sm:$0xff]
    %v1259 = vld [vmem:[%s3 + $0x60] sm:$0xff]
    %v1260 = vld [vmem:[%s3 + $0x68] sm:$0xff]
    %v1261 = vld [vmem:[%s3 + $0x70] sm:$0xff]
    %v1262 = vld [vmem:[%s3 + $0x78] sm:$0xff]
    %v1263 = vld [vmem:[%s3 + $0x80] sm:$0xff]
    %v1264 = vld [vmem:[%s3 + $0x88] sm:$0xff]
    %v1265 = vld [vmem:[%s3 + $0x90] sm:$0xff]
    %v1266 = vld [vmem:[%s3 + $0x98] sm:$0xff]
    %v1267 = vld [vmem:[%s3 + $0xa0] sm:$0xff]
    %v1268 = vld [vmem:[%s3 + $0xa8] sm:$0xff]
    %v1269 = vld [vmem:[%s3 + $0xb0] sm:$0xff]
    %v1270 = vld [vmem:[%s3 + $0xb8] sm:$0xff]
    %v1271 = vld [vmem:[%s3 + $0xc0] sm:$0xff]
    %v1272 = vld [vmem:[%s3 + $0xc8] sm:$0xff]
    %v1273 = vld [vmem:[%s3 + $0xd0] sm:$0xff]
    %v1274 = vld [vmem:[%s3 + $0xd8] sm:$0xff]
    %v1275 = vld [vmem:[%s3 + $0xe0] sm:$0xff]
    %v1276 = vld [vmem:[%s3 + $0xe8] sm:$0xff]
    %v1277 = vld [vmem:[%s3 + $0xf0] sm:$0xff]
    %v1278 = vld [vmem:[%s3 + $0xf8] sm:$0xff]
    %v1279 = vld [vmem:[%s3 + $0x100] sm:$0xff]
    %v1280 = vld [vmem:[%s3 + $0x108] sm:$0xff]
    %v1281 = vld [vmem:[%s3 + $0x110] sm:$0xff]
    %v1282 = vld [vmem:[%s3 + $0x118] sm:$0xff]
    %v1283 = vld [vmem:[%s3 + $0x120] sm:$0xff]
    %v1284 = vld [vmem:[%s3 + $0x128] sm:$0xff]
    %v1285 = vld [vmem:[%s3 + $0x130] sm:$0xff]
    %v1286 = vld [vmem:[%s3 + $0x138] sm:$0xff]
    %v1287 = vld [vmem:[%s3 + $0x140] sm:$0xff]
    %v1288 = vld [vmem:[%s3 + $0x148] sm:$0xff]
    %v1289 = vld [vmem:[%s3 + $0x150] sm:$0xff]
    %v1290 = vld [vmem:[%s3 + $0x158] sm:$0xff]
    %v1291 = vld [vmem:[%s3 + $0x160] sm:$0xff]
    %v1292 = vld [vmem:[%s3 + $0x168] sm:$0xff]
    %v1293 = vld [vmem:[%s3 + $0x170] sm:$0xff]
    %v1294 = vld [vmem:[%s3 + $0x178] sm:$0xff]
    %v1295 = vld [vmem:[%s3 + $0x180] sm:$0xff]
    %v1296 = vld [vmem:[%s3 + $0x188] sm:$0xff]
    %v1297 = vld [vmem:[%s3 + $0x190] sm:$0xff]
    %v1298 = vld [vmem:[%s3 + $0x198] sm:$0xff]
    %v1299 = vld [vmem:[%s3 + $0x1a0] sm:$0xff]
    %v1300 = vld [vmem:[%s3 + $0x1a8] sm:$0xff]
    %v1301 = vld [vmem:[%s3 + $0x1b0] sm:$0xff]
    %v1302 = vld [vmem:[%s3 + $0x1b8] sm:$0xff]
    %v1303 = vld [vmem:[%s3 + $0x1c0] sm:$0xff]
    %v1304 = vld [vmem:[%s3 + $0x1c8] sm:$0xff]
    %v1305 = vld [vmem:[%s3 + $0x1d0] sm:$0xff]
    %v1306 = vld [vmem:[%s3 + $0x1d8] sm:$0xff]
    %v1307 = vld [vmem:[%s3 + $0x1e0] sm:$0xff]
    %v1308 = vld [vmem:[%s3 + $0x1e8] sm:$0xff]
    %v1309 = vld [vmem:[%s3 + $0x1f0] sm:$0xff]
    %v1310 = vld [vmem:[%s3 + $0x1f8] sm:$0xff]
    %v1311 = vld [vmem:[%s3 + $0x200] sm:$0xff]
    %v1312 = vld [vmem:[%s3 + $0x208] sm:$0xff]
    %v1313 = vld [vmem:[%s3 + $0x210] sm:$0xff]
    %v1314 = vld [vmem:[%s3 + $0x218] sm:$0xff]
    %v1315 = vld [vmem:[%s3 + $0x220] sm:$0xff]
    %v1316 = vld [vmem:[%s3 + $0x228] sm:$0xff]
    %v1317 = vld [vmem:[%s3 + $0x230] sm:$0xff]
    %v1318 = vld [vmem:[%s3 + $0x238] sm:$0xff]
    %v1319 = vld [vmem:[%s3 + $0x240] sm:$0xff]
    %v1320 = vld [vmem:[%s3 + $0x248] sm:$0xff]
    %v1321 = vld [vmem:[%s3 + $0x250] sm:$0xff]
    %v1322 = vld [vmem:[%s3 + $0x258] sm:$0xff]
    %v1323 = vld [vmem:[%s3 + $0x260] sm:$0xff]
    %v1324 = vld [vmem:[%s3 + $0x268] sm:$0xff]
    %v1325 = vld [vmem:[%s3 + $0x270] sm:$0xff]
    %v1326 = vld [vmem:[%s3 + $0x278] sm:$0xff]
    %v1327 = vld [vmem:[%s3 + $0x280] sm:$0xff]
    %v1328 = vld [vmem:[%s3 + $0x288] sm:$0xff]
    %v1329 = vld [vmem:[%s3 + $0x290] sm:$0xff]
    %v1330 = vld [vmem:[%s3 + $0x298] sm:$0xff]
    %v1331 = vld [vmem:[%s3 + $0x2a0] sm:$0xff]
    %v1332 = vld [vmem:[%s3 + $0x2a8] sm:$0xff]
    %v1333 = vld [vmem:[%s3 + $0x2b0] sm:$0xff]
    %v1334 = vld [vmem:[%s3 + $0x2b8] sm:$0xff]
    %v1335 = vld [vmem:[%s3 + $0x2c0] sm:$0xff]
    %v1336 = vld [vmem:[%s3 + $0x2c8] sm:$0xff]
    %v1337 = vld [vmem:[%s3 + $0x2d0] sm:$0xff]
    %v1338 = vld [vmem:[%s3 + $0x2d8] sm:$0xff]
    %v1339 = vld [vmem:[%s3 + $0x2e0] sm:$0xff]
    %v1340 = vld [vmem:[%s3 + $0x2e8] sm:$0xff]
    %v1341 = vld [vmem:[%s3 + $0x2f0] sm:$0xff]
    %v1342 = vld [vmem:[%s3 + $0x2f8] sm:$0xff]
    %v1343 = vld [vmem:[%s3 + $0x300] sm:$0xff]
    %v1344 = vld [vmem:[%s3 + $0x308] sm:$0xff]
    %v1345 = vld [vmem:[%s3 + $0x310] sm:$0xff]
    %v1346 = vld [vmem:[%s3 + $0x318] sm:$0xff]
    %v1347 = vld [vmem:[%s3 + $0x320] sm:$0xff]
    %v1348 = vld [vmem:[%s3 + $0x328] sm:$0xff]
    %v1349 = vld [vmem:[%s3 + $0x330] sm:$0xff]
    %v1350 = vld [vmem:[%s3 + $0x338] sm:$0xff]
    %v1351 = vld [vmem:[%s3 + $0x340] sm:$0xff]
    %v1352 = vld [vmem:[%s3 + $0x348] sm:$0xff]
    %v1353 = vld [vmem:[%s3 + $0x350] sm:$0xff]
    %v1354 = vld [vmem:[%s3 + $0x358] sm:$0xff]
    %v1355 = vld [vmem:[%s3 + $0x360] sm:$0xff]
    %v1356 = vld [vmem:[%s3 + $0x368] sm:$0xff]
    %v1357 = vld [vmem:[%s3 + $0x370] sm:$0xff]
    %v1358 = vld [vmem:[%s3 + $0x378] sm:$0xff]
    %v1359 = vld [vmem:[%s3 + $0x380] sm:$0xff]
    %v1360 = vld [vmem:[%s3 + $0x388] sm:$0xff]
    %v1361 = vld [vmem:[%s3 + $0x390] sm:$0xff]
    %v1362 = vld [vmem:[%s3 + $0x398] sm:$0xff]
    %v1363 = vld [vmem:[%s3 + $0x3a0] sm:$0xff]
    %v1364 = vld [vmem:[%s3 + $0x3a8] sm:$0xff]
    %v1365 = vld [vmem:[%s3 + $0x3b0] sm:$0xff]
    %v1366 = vld [vmem:[%s3 + $0x3b8] sm:$0xff]
    %v1367 = vld [vmem:[%s3 + $0x3c0] sm:$0xff]
    %v1368 = vld [vmem:[%s3 + $0x3c8] sm:$0xff]
    %v1369 = vld [vmem:[%s3 + $0x3d0] sm:$0xff]
    %v1370 = vld [vmem:[%s3 + $0x3d8] sm:$0xff]
    %v1371 = vld [vmem:[%s3 + $0x3e0] sm:$0xff]
    %v1372 = vld [vmem:[%s3 + $0x3e8] sm:$0xff]
    %v1373 = vld [vmem:[%s3 + $0x3f0] sm:$0xff]
    %v1374 = vld [vmem:[%s3 + $0x3f8] sm:$0xff]
    %v1375 = vld [vmem:[%s3 + $0x400] sm:$0xff]
    %v1376 = vld [vmem:[%s3 + $0x408] sm:$0xff]
    %v1377 = vld [vmem:[%s3 + $0x410] sm:$0xff]
    %v1378 = vld [vmem:[%s3 + $0x418] sm:$0xff]
    %v1379 = vld [vmem:[%s3 + $0x420] sm:$0xff]
    %v1380 = vld [vmem:[%s3 + $0x428] sm:$0xff]
    %v1381 = vld [vmem:[%s3 + $0x430] sm:$0xff]
    %v1382 = vld [vmem:[%s3 + $0x438] sm:$0xff]
    %v1383 = vld [vmem:[%s3 + $0x440] sm:$0xff]
    %v1384 = vld [vmem:[%s3 + $0x448] sm:$0xff]
    %v1385 = vld [vmem:[%s3 + $0x450] sm:$0xff]
    %v1386 = vld [vmem:[%s3 + $0x458] sm:$0xff]
    %v1387 = vld [vmem:[%s3 + $0x460] sm:$0xff]
    %v1388 = vld [vmem:[%s3 + $0x468] sm:$0xff]
    %v1389 = vld [vmem:[%s3 + $0x470] sm:$0xff]
    %v1390 = vld [vmem:[%s3 + $0x478] sm:$0xff]
    %v1391 = vld [vmem:[%s3 + $0x480] sm:$0xff]
    %v1392 = vld [vmem:[%s3 + $0x488] sm:$0xff]
    %v1393 = vld [vmem:[%s3 + $0x490] sm:$0xff]
    %v1394 = vld [vmem:[%s3 + $0x498] sm:$0xff]
    %v1395 = vld [vmem:[%s3 + $0x4a0] sm:$0xff]
    %v1396 = vld [vmem:[%s3 + $0x4a8] sm:$0xff]
    %v1397 = vld [vmem:[%s3 + $0x4b0] sm:$0xff]
    %v1398 = vld [vmem:[%s3 + $0x4b8] sm:$0xff]
    %v1399 = vld [vmem:[%s3 + $0x4c0] sm:$0xff]
    %v1400 = vld [vmem:[%s3 + $0x4c8] sm:$0xff]
    %v1401 = vld [vmem:[%s3 + $0x4d0] sm:$0xff]
    %v1402 = vld [vmem:[%s3 + $0x4d8] sm:$0xff]
    %v1403 = vld [vmem:[%s3 + $0x4e0] sm:$0xff]
    %v1404 = vld [vmem:[%s3 + $0x4e8] sm:$0xff]
    %v1405 = vld [vmem:[%s3 + $0x4f0] sm:$0xff]
    %v1406 = vld [vmem:[%s3 + $0x4f8] sm:$0xff]
    %v1407 = vld [vmem:[%s3 + $0x500] sm:$0xff]
    %v1408 = vld [vmem:[%s3 + $0x508] sm:$0xff]
    %v1409 = vld [vmem:[%s3 + $0x510] sm:$0xff]
    %v1410 = vld [vmem:[%s3 + $0x518] sm:$0xff]
    %v1411 = vld [vmem:[%s3 + $0x520] sm:$0xff]
    %v1412 = vld [vmem:[%s3 + $0x528] sm:$0xff]
    %v1413 = vld [vmem:[%s3 + $0x530] sm:$0xff]
    %v1414 = vld [vmem:[%s3 + $0x538] sm:$0xff]
    %v1415 = vld [vmem:[%s3 + $0x540] sm:$0xff]
    %v1416 = vld [vmem:[%s3 + $0x548] sm:$0xff]
    %v1417 = vld [vmem:[%s3 + $0x550] sm:$0xff]
    %v1418 = vld [vmem:[%s3 + $0x558] sm:$0xff]
    %v1419 = vld [vmem:[%s3 + $0x560] sm:$0xff]
    %v1420 = vld [vmem:[%s3 + $0x568] sm:$0xff]
    %v1421 = vld [vmem:[%s3 + $0x570] sm:$0xff]
    %v1422 = vld [vmem:[%s3 + $0x578] sm:$0xff]
    %v1423 = vld [vmem:[%s3 + $0x580] sm:$0xff]
    %v1424 = vld [vmem:[%s3 + $0x588] sm:$0xff]
    %v1425 = vld [vmem:[%s3 + $0x590] sm:$0xff]
    %v1426 = vld [vmem:[%s3 + $0x598] sm:$0xff]
    %v1427 = vld [vmem:[%s3 + $0x5a0] sm:$0xff]
    %v1428 = vld [vmem:[%s3 + $0x5a8] sm:$0xff]
    %v1429 = vld [vmem:[%s3 + $0x5b0] sm:$0xff]
    %v1430 = vld [vmem:[%s3 + $0x5b8] sm:$0xff]
    %v1431 = vld [vmem:[%s3 + $0x5c0] sm:$0xff]
    %v1432 = vld [vmem:[%s3 + $0x5c8] sm:$0xff]
    %v1433 = vld [vmem:[%s3 + $0x5d0] sm:$0xff]
    %v1434 = vld [vmem:[%s3 + $0x5d8] sm:$0xff]
    %v1435 = vld [vmem:[%s3 + $0x5e0] sm:$0xff]
    %v1436 = vld [vmem:[%s3 + $0x5e8] sm:$0xff]
    %v1437 = vld [vmem:[%s3 + $0x5f0] sm:$0xff]
    %v1438 = vld [vmem:[%s3 + $0x5f8] sm:$0xff]
    %v1439 = vld [vmem:[%s3 + $0x600] sm:$0xff]
    %v1440 = vld [vmem:[%s3 + $0x608] sm:$0xff]
    %v1441 = vld [vmem:[%s3 + $0x610] sm:$0xff]
    %v1442 = vld [vmem:[%s3 + $0x618] sm:$0xff]
    %v1443 = vld [vmem:[%s3 + $0x620] sm:$0xff]
    %v1444 = vld [vmem:[%s3 + $0x628] sm:$0xff]
    %v1445 = vld [vmem:[%s3 + $0x630] sm:$0xff]
    %v1446 = vld [vmem:[%s3 + $0x638] sm:$0xff]
    %v1447 = vld [vmem:[%s3 + $0x640] sm:$0xff]
    %v1448 = vld [vmem:[%s3 + $0x648] sm:$0xff]
    %v1449 = vld [vmem:[%s3 + $0x650] sm:$0xff]
    %v1450 = vld [vmem:[%s3 + $0x658] sm:$0xff]
    %v1451 = vld [vmem:[%s3 + $0x660] sm:$0xff]
    %v1452 = vld [vmem:[%s3 + $0x668] sm:$0xff]
    %v1453 = vld [vmem:[%s3 + $0x670] sm:$0xff]
    %v1454 = vld [vmem:[%s3 + $0x678] sm:$0xff]
    %v1455 = vld [vmem:[%s3 + $0x680] sm:$0xff]
    %v1456 = vld [vmem:[%s3 + $0x688] sm:$0xff]
    %v1457 = vld [vmem:[%s3 + $0x690] sm:$0xff]
    %v1458 = vld [vmem:[%s3 + $0x698] sm:$0xff]
    %v1459 = vld [vmem:[%s3 + $0x6a0] sm:$0xff]
    %v1460 = vld [vmem:[%s3 + $0x6a8] sm:$0xff]
    %v1461 = vld [vmem:[%s3 + $0x6b0] sm:$0xff]
    %v1462 = vld [vmem:[%s3 + $0x6b8] sm:$0xff]
    %v1463 = vld [vmem:[%s3 + $0x6c0] sm:$0xff]
    %v1464 = vld [vmem:[%s3 + $0x6c8] sm:$0xff]
    %v1465 = vld [vmem:[%s3 + $0x6d0] sm:$0xff]
    %v1466 = vld [vmem:[%s3 + $0x6d8] sm:$0xff]
    %v1467 = vld [vmem:[%s3 + $0x6e0] sm:$0xff]
    %v1468 = vld [vmem:[%s3 + $0x6e8] sm:$0xff]
    %v1469 = vld [vmem:[%s3 + $0x6f0] sm:$0xff]
    %v1470 = vld [vmem:[%s3 + $0x6f8] sm:$0xff]
    %v1471 = vld [vmem:[%s3 + $0x700] sm:$0xff]
    %v1472 = vld [vmem:[%s3 + $0x708] sm:$0xff]
    %v1473 = vld [vmem:[%s3 + $0x710] sm:$0xff]
    %v1474 = vld [vmem:[%s3 + $0x718] sm:$0xff]
    %v1475 = vld [vmem:[%s3 + $0x720] sm:$0xff]
    %v1476 = vld [vmem:[%s3 + $0x728] sm:$0xff]
    %v1477 = vld [vmem:[%s3 + $0x730] sm:$0xff]
    %v1478 = vld [vmem:[%s3 + $0x738] sm:$0xff]
    %v1479 = vld [vmem:[%s3 + $0x740] sm:$0xff]
    %v1480 = vld [vmem:[%s3 + $0x748] sm:$0xff]
    %v1481 = vld [vmem:[%s3 + $0x750] sm:$0xff]
    %v1482 = vld [vmem:[%s3 + $0x758] sm:$0xff]
    %v1483 = vld [vmem:[%s3 + $0x760] sm:$0xff]
    %v1484 = vld [vmem:[%s3 + $0x768] sm:$0xff]
    %v1485 = vld [vmem:[%s3 + $0x770] sm:$0xff]
    %v1486 = vld [vmem:[%s3 + $0x778] sm:$0xff]
    %v1487 = vld [vmem:[%s3 + $0x780] sm:$0xff]
    %v1488 = vld [vmem:[%s3 + $0x788] sm:$0xff]
    %v1489 = vld [vmem:[%s3 + $0x790] sm:$0xff]
    %v1490 = vld [vmem:[%s3 + $0x798] sm:$0xff]
    %v1491 = vld [vmem:[%s3 + $0x7a0] sm:$0xff]
    %v1492 = vld [vmem:[%s3 + $0x7a8] sm:$0xff]
    %v1493 = vld [vmem:[%s3 + $0x7b0] sm:$0xff]
    %v1494 = vld [vmem:[%s3 + $0x7b8] sm:$0xff]
    %v1495 = vld [vmem:[%s3 + $0x7c0] sm:$0xff]
    %v1496 = vld [vmem:[%s3 + $0x7c8] sm:$0xff]
    %v1497 = vld [vmem:[%s3 + $0x7d0] sm:$0xff]
    %v1498 = vld [vmem:[%s3 + $0x7d8] sm:$0xff]
    %v1499 = vld [vmem:[%s3 + $0x7e0] sm:$0xff]
    %v1500 = vld [vmem:[%s3 + $0x7e8] sm:$0xff]
    %v1501 = vld [vmem:[%s3 + $0x7f0] sm:$0xff]
    %v1502 = vld [vmem:[%s3 + $0x7f8] sm:$0xff]
    %v1503 = vld [vmem:[%s4] sm:$0x3]
    %v1505 = vlaneseq
    %v1506 = vshrl.u32 %v1505, 7
    %v1507 = vsub.s32 0, %v1506
    %v1508 = vrot.slane %v1503, %v1507
    %v1509 = vlaneseq
    %v1510 = vshrl.u32 %v1509, 7
    %v1511 = vsub.s32 1, %v1510
    %v1512 = vrot.slane %v1503, %v1511
    %v1771 = vunpack.c.l.b16 %v1247
    %v1772 = vunpack.c.h.b16 %v1247
    %v1773 = vunpack.c.l.b16 %v1248
    %v1774 = vunpack.c.h.b16 %v1248
    %v1775 = vunpack.c.l.b16 %v1249
    %v1776 = vunpack.c.h.b16 %v1249
    %v1777 = vunpack.c.l.b16 %v1250
    %v1778 = vunpack.c.h.b16 %v1250
    %v1779 = vunpack.c.l.b16 %v1251
    %v1780 = vunpack.c.h.b16 %v1251
    %v1781 = vunpack.c.l.b16 %v1252
    %v1782 = vunpack.c.h.b16 %v1252
    %v1783 = vunpack.c.l.b16 %v1253
    %v1784 = vunpack.c.h.b16 %v1253
    %v1785 = vunpack.c.l.b16 %v1254
    %v1786 = vunpack.c.h.b16 %v1254
    %v1787 = vunpack.c.l.b16 %v1255
    %v1788 = vunpack.c.h.b16 %v1255
    %v1789 = vunpack.c.l.b16 %v1256
    %v1790 = vunpack.c.h.b16 %v1256
    %v1791 = vunpack.c.l.b16 %v1257
    %v1792 = vunpack.c.h.b16 %v1257
    %v1793 = vunpack.c.l.b16 %v1258
    %v1794 = vunpack.c.h.b16 %v1258
    %v1795 = vunpack.c.l.b16 %v1259
    %v1796 = vunpack.c.h.b16 %v1259
    %v1797 = vunpack.c.l.b16 %v1260
    %v1798 = vunpack.c.h.b16 %v1260
    %v1799 = vunpack.c.l.b16 %v1261
    %v1800 = vunpack.c.h.b16 %v1261
    %v1801 = vunpack.c.l.b16 %v1262
    %v1802 = vunpack.c.h.b16 %v1262
    %v1803 = vunpack.c.l.b16 %v1263
    %v1804 = vunpack.c.h.b16 %v1263
    %v1805 = vunpack.c.l.b16 %v1264
    %v1806 = vunpack.c.h.b16 %v1264
    %v1807 = vunpack.c.l.b16 %v1265
    %v1808 = vunpack.c.h.b16 %v1265
    %v1809 = vunpack.c.l.b16 %v1266
    %v1810 = vunpack.c.h.b16 %v1266
    %v1811 = vunpack.c.l.b16 %v1267
    %v1812 = vunpack.c.h.b16 %v1267
    %v1813 = vunpack.c.l.b16 %v1268
    %v1814 = vunpack.c.h.b16 %v1268
    %v1815 = vunpack.c.l.b16 %v1269
    %v1816 = vunpack.c.h.b16 %v1269
    %v1817 = vunpack.c.l.b16 %v1270
    %v1818 = vunpack.c.h.b16 %v1270
    %v1819 = vunpack.c.l.b16 %v1271
    %v1820 = vunpack.c.h.b16 %v1271
    %v1821 = vunpack.c.l.b16 %v1272
    %v1822 = vunpack.c.h.b16 %v1272
    %v1823 = vunpack.c.l.b16 %v1273
    %v1824 = vunpack.c.h.b16 %v1273
    %v1825 = vunpack.c.l.b16 %v1274
    %v1826 = vunpack.c.h.b16 %v1274
    %v1827 = vunpack.c.l.b16 %v1275
    %v1828 = vunpack.c.h.b16 %v1275
    %v1829 = vunpack.c.l.b16 %v1276
    %v1830 = vunpack.c.h.b16 %v1276
    %v1831 = vunpack.c.l.b16 %v1277
    %v1832 = vunpack.c.h.b16 %v1277
    %v1833 = vunpack.c.l.b16 %v1278
    %v1834 = vunpack.c.h.b16 %v1278
    %v1835 = vunpack.c.l.b16 %v1279
    %v1836 = vunpack.c.h.b16 %v1279
    %v1837 = vunpack.c.l.b16 %v1280
    %v1838 = vunpack.c.h.b16 %v1280
    %v1839 = vunpack.c.l.b16 %v1281
    %v1840 = vunpack.c.h.b16 %v1281
    %v1841 = vunpack.c.l.b16 %v1282
    %v1842 = vunpack.c.h.b16 %v1282
    %v1843 = vunpack.c.l.b16 %v1283
    %v1844 = vunpack.c.h.b16 %v1283
    %v1845 = vunpack.c.l.b16 %v1284
    %v1846 = vunpack.c.h.b16 %v1284
    %v1847 = vunpack.c.l.b16 %v1285
    %v1848 = vunpack.c.h.b16 %v1285
    %v1849 = vunpack.c.l.b16 %v1286
    %v1850 = vunpack.c.h.b16 %v1286
    %v1851 = vunpack.c.l.b16 %v1287
    %v1852 = vunpack.c.h.b16 %v1287
    %v1853 = vunpack.c.l.b16 %v1288
    %v1854 = vunpack.c.h.b16 %v1288
    %v1855 = vunpack.c.l.b16 %v1289
    %v1856 = vunpack.c.h.b16 %v1289
    %v1857 = vunpack.c.l.b16 %v1290
    %v1858 = vunpack.c.h.b16 %v1290
    %v1859 = vunpack.c.l.b16 %v1291
    %v1860 = vunpack.c.h.b16 %v1291
    %v1861 = vunpack.c.l.b16 %v1292
    %v1862 = vunpack.c.h.b16 %v1292
    %v1863 = vunpack.c.l.b16 %v1293
    %v1864 = vunpack.c.h.b16 %v1293
    %v1865 = vunpack.c.l.b16 %v1294
    %v1866 = vunpack.c.h.b16 %v1294
    %v1867 = vunpack.c.l.b16 %v1295
    %v1868 = vunpack.c.h.b16 %v1295
    %v1869 = vunpack.c.l.b16 %v1296
    %v1870 = vunpack.c.h.b16 %v1296
    %v1871 = vunpack.c.l.b16 %v1297
    %v1872 = vunpack.c.h.b16 %v1297
    %v1873 = vunpack.c.l.b16 %v1298
    %v1874 = vunpack.c.h.b16 %v1298
    %v1875 = vunpack.c.l.b16 %v1299
    %v1876 = vunpack.c.h.b16 %v1299
    %v1877 = vunpack.c.l.b16 %v1300
    %v1878 = vunpack.c.h.b16 %v1300
    %v1879 = vunpack.c.l.b16 %v1301
    %v1880 = vunpack.c.h.b16 %v1301
    %v1881 = vunpack.c.l.b16 %v1302
    %v1882 = vunpack.c.h.b16 %v1302
    %v1883 = vunpack.c.l.b16 %v1303
    %v1884 = vunpack.c.h.b16 %v1303
    %v1885 = vunpack.c.l.b16 %v1304
    %v1886 = vunpack.c.h.b16 %v1304
    %v1887 = vunpack.c.l.b16 %v1305
    %v1888 = vunpack.c.h.b16 %v1305
    %v1889 = vunpack.c.l.b16 %v1306
    %v1890 = vunpack.c.h.b16 %v1306
    %v1891 = vunpack.c.l.b16 %v1307
    %v1892 = vunpack.c.h.b16 %v1307
    %v1893 = vunpack.c.l.b16 %v1308
    %v1894 = vunpack.c.h.b16 %v1308
    %v1895 = vunpack.c.l.b16 %v1309
    %v1896 = vunpack.c.h.b16 %v1309
    %v1897 = vunpack.c.l.b16 %v1310
    %v1898 = vunpack.c.h.b16 %v1310
    %v1899 = vunpack.c.l.b16 %v1311
    %v1900 = vunpack.c.h.b16 %v1311
    %v1901 = vunpack.c.l.b16 %v1312
    %v1902 = vunpack.c.h.b16 %v1312
    %v1903 = vunpack.c.l.b16 %v1313
    %v1904 = vunpack.c.h.b16 %v1313
    %v1905 = vunpack.c.l.b16 %v1314
    %v1906 = vunpack.c.h.b16 %v1314
    %v1907 = vunpack.c.l.b16 %v1315
    %v1908 = vunpack.c.h.b16 %v1315
    %v1909 = vunpack.c.l.b16 %v1316
    %v1910 = vunpack.c.h.b16 %v1316
    %v1911 = vunpack.c.l.b16 %v1317
    %v1912 = vunpack.c.h.b16 %v1317
    %v1913 = vunpack.c.l.b16 %v1318
    %v1914 = vunpack.c.h.b16 %v1318
    %v1915 = vunpack.c.l.b16 %v1319
    %v1916 = vunpack.c.h.b16 %v1319
    %v1917 = vunpack.c.l.b16 %v1320
    %v1918 = vunpack.c.h.b16 %v1320
    %v1919 = vunpack.c.l.b16 %v1321
    %v1920 = vunpack.c.h.b16 %v1321
    %v1921 = vunpack.c.l.b16 %v1322
    %v1922 = vunpack.c.h.b16 %v1322
    %v1923 = vunpack.c.l.b16 %v1323
    %v1924 = vunpack.c.h.b16 %v1323
    %v1925 = vunpack.c.l.b16 %v1324
    %v1926 = vunpack.c.h.b16 %v1324
    %v1927 = vunpack.c.l.b16 %v1325
    %v1928 = vunpack.c.h.b16 %v1325
    %v1929 = vunpack.c.l.b16 %v1326
    %v1930 = vunpack.c.h.b16 %v1326
    %v1931 = vunpack.c.l.b16 %v1327
    %v1932 = vunpack.c.h.b16 %v1327
    %v1933 = vunpack.c.l.b16 %v1328
    %v1934 = vunpack.c.h.b16 %v1328
    %v1935 = vunpack.c.l.b16 %v1329
    %v1936 = vunpack.c.h.b16 %v1329
    %v1937 = vunpack.c.l.b16 %v1330
    %v1938 = vunpack.c.h.b16 %v1330
    %v1939 = vunpack.c.l.b16 %v1331
    %v1940 = vunpack.c.h.b16 %v1331
    %v1941 = vunpack.c.l.b16 %v1332
    %v1942 = vunpack.c.h.b16 %v1332
    %v1943 = vunpack.c.l.b16 %v1333
    %v1944 = vunpack.c.h.b16 %v1333
    %v1945 = vunpack.c.l.b16 %v1334
    %v1946 = vunpack.c.h.b16 %v1334
    %v1947 = vunpack.c.l.b16 %v1335
    %v1948 = vunpack.c.h.b16 %v1335
    %v1949 = vunpack.c.l.b16 %v1336
    %v1950 = vunpack.c.h.b16 %v1336
    %v1951 = vunpack.c.l.b16 %v1337
    %v1952 = vunpack.c.h.b16 %v1337
    %v1953 = vunpack.c.l.b16 %v1338
    %v1954 = vunpack.c.h.b16 %v1338
    %v1955 = vunpack.c.l.b16 %v1339
    %v1956 = vunpack.c.h.b16 %v1339
    %v1957 = vunpack.c.l.b16 %v1340
    %v1958 = vunpack.c.h.b16 %v1340
    %v1959 = vunpack.c.l.b16 %v1341
    %v1960 = vunpack.c.h.b16 %v1341
    %v1961 = vunpack.c.l.b16 %v1342
    %v1962 = vunpack.c.h.b16 %v1342
    %v1963 = vunpack.c.l.b16 %v1343
    %v1964 = vunpack.c.h.b16 %v1343
    %v1965 = vunpack.c.l.b16 %v1344
    %v1966 = vunpack.c.h.b16 %v1344
    %v1967 = vunpack.c.l.b16 %v1345
    %v1968 = vunpack.c.h.b16 %v1345
    %v1969 = vunpack.c.l.b16 %v1346
    %v1970 = vunpack.c.h.b16 %v1346
    %v1971 = vunpack.c.l.b16 %v1347
    %v1972 = vunpack.c.h.b16 %v1347
    %v1973 = vunpack.c.l.b16 %v1348
    %v1974 = vunpack.c.h.b16 %v1348
    %v1975 = vunpack.c.l.b16 %v1349
    %v1976 = vunpack.c.h.b16 %v1349
    %v1977 = vunpack.c.l.b16 %v1350
    %v1978 = vunpack.c.h.b16 %v1350
    %v1979 = vunpack.c.l.b16 %v1351
    %v1980 = vunpack.c.h.b16 %v1351
    %v1981 = vunpack.c.l.b16 %v1352
    %v1982 = vunpack.c.h.b16 %v1352
    %v1983 = vunpack.c.l.b16 %v1353
    %v1984 = vunpack.c.h.b16 %v1353
    %v1985 = vunpack.c.l.b16 %v1354
    %v1986 = vunpack.c.h.b16 %v1354
    %v1987 = vunpack.c.l.b16 %v1355
    %v1988 = vunpack.c.h.b16 %v1355
    %v1989 = vunpack.c.l.b16 %v1356
    %v1990 = vunpack.c.h.b16 %v1356
    %v1991 = vunpack.c.l.b16 %v1357
    %v1992 = vunpack.c.h.b16 %v1357
    %v1993 = vunpack.c.l.b16 %v1358
    %v1994 = vunpack.c.h.b16 %v1358
    %v1995 = vunpack.c.l.b16 %v1359
    %v1996 = vunpack.c.h.b16 %v1359
    %v1997 = vunpack.c.l.b16 %v1360
    %v1998 = vunpack.c.h.b16 %v1360
    %v1999 = vunpack.c.l.b16 %v1361
    %v2000 = vunpack.c.h.b16 %v1361
    %v2001 = vunpack.c.l.b16 %v1362
    %v2002 = vunpack.c.h.b16 %v1362
    %v2003 = vunpack.c.l.b16 %v1363
    %v2004 = vunpack.c.h.b16 %v1363
    %v2005 = vunpack.c.l.b16 %v1364
    %v2006 = vunpack.c.h.b16 %v1364
    %v2007 = vunpack.c.l.b16 %v1365
    %v2008 = vunpack.c.h.b16 %v1365
    %v2009 = vunpack.c.l.b16 %v1366
    %v2010 = vunpack.c.h.b16 %v1366
    %v2011 = vunpack.c.l.b16 %v1367
    %v2012 = vunpack.c.h.b16 %v1367
    %v2013 = vunpack.c.l.b16 %v1368
    %v2014 = vunpack.c.h.b16 %v1368
    %v2015 = vunpack.c.l.b16 %v1369
    %v2016 = vunpack.c.h.b16 %v1369
    %v2017 = vunpack.c.l.b16 %v1370
    %v2018 = vunpack.c.h.b16 %v1370
    %v2019 = vunpack.c.l.b16 %v1371
    %v2020 = vunpack.c.h.b16 %v1371
    %v2021 = vunpack.c.l.b16 %v1372
    %v2022 = vunpack.c.h.b16 %v1372
    %v2023 = vunpack.c.l.b16 %v1373
    %v2024 = vunpack.c.h.b16 %v1373
    %v2025 = vunpack.c.l.b16 %v1374
    %v2026 = vunpack.c.h.b16 %v1374
    %v2027 = vunpack.c.l.b16 %v1375
    %v2028 = vunpack.c.h.b16 %v1375
    %v2029 = vunpack.c.l.b16 %v1376
    %v2030 = vunpack.c.h.b16 %v1376
    %v2031 = vunpack.c.l.b16 %v1377
    %v2032 = vunpack.c.h.b16 %v1377
    %v2033 = vunpack.c.l.b16 %v1378
    %v2034 = vunpack.c.h.b16 %v1378
    %v2035 = vunpack.c.l.b16 %v1379
    %v2036 = vunpack.c.h.b16 %v1379
    %v2037 = vunpack.c.l.b16 %v1380
    %v2038 = vunpack.c.h.b16 %v1380
    %v2039 = vunpack.c.l.b16 %v1381
    %v2040 = vunpack.c.h.b16 %v1381
    %v2041 = vunpack.c.l.b16 %v1382
    %v2042 = vunpack.c.h.b16 %v1382
    %v2043 = vunpack.c.l.b16 %v1383
    %v2044 = vunpack.c.h.b16 %v1383
    %v2045 = vunpack.c.l.b16 %v1384
    %v2046 = vunpack.c.h.b16 %v1384
    %v2047 = vunpack.c.l.b16 %v1385
    %v2048 = vunpack.c.h.b16 %v1385
    %v2049 = vunpack.c.l.b16 %v1386
    %v2050 = vunpack.c.h.b16 %v1386
    %v2051 = vunpack.c.l.b16 %v1387
    %v2052 = vunpack.c.h.b16 %v1387
    %v2053 = vunpack.c.l.b16 %v1388
    %v2054 = vunpack.c.h.b16 %v1388
    %v2055 = vunpack.c.l.b16 %v1389
    %v2056 = vunpack.c.h.b16 %v1389
    %v2057 = vunpack.c.l.b16 %v1390
    %v2058 = vunpack.c.h.b16 %v1390
    %v2059 = vunpack.c.l.b16 %v1391
    %v2060 = vunpack.c.h.b16 %v1391
    %v2061 = vunpack.c.l.b16 %v1392
    %v2062 = vunpack.c.h.b16 %v1392
    %v2063 = vunpack.c.l.b16 %v1393
    %v2064 = vunpack.c.h.b16 %v1393
    %v2065 = vunpack.c.l.b16 %v1394
    %v2066 = vunpack.c.h.b16 %v1394
    %v2067 = vunpack.c.l.b16 %v1395
    %v2068 = vunpack.c.h.b16 %v1395
    %v2069 = vunpack.c.l.b16 %v1396
    %v2070 = vunpack.c.h.b16 %v1396
    %v2071 = vunpack.c.l.b16 %v1397
    %v2072 = vunpack.c.h.b16 %v1397
    %v2073 = vunpack.c.l.b16 %v1398
    %v2074 = vunpack.c.h.b16 %v1398
    %v2075 = vunpack.c.l.b16 %v1399
    %v2076 = vunpack.c.h.b16 %v1399
    %v2077 = vunpack.c.l.b16 %v1400
    %v2078 = vunpack.c.h.b16 %v1400
    %v2079 = vunpack.c.l.b16 %v1401
    %v2080 = vunpack.c.h.b16 %v1401
    %v2081 = vunpack.c.l.b16 %v1402
    %v2082 = vunpack.c.h.b16 %v1402
    %v2083 = vunpack.c.l.b16 %v1403
    %v2084 = vunpack.c.h.b16 %v1403
    %v2085 = vunpack.c.l.b16 %v1404
    %v2086 = vunpack.c.h.b16 %v1404
    %v2087 = vunpack.c.l.b16 %v1405
    %v2088 = vunpack.c.h.b16 %v1405
    %v2089 = vunpack.c.l.b16 %v1406
    %v2090 = vunpack.c.h.b16 %v1406
    %v2091 = vunpack.c.l.b16 %v1407
    %v2092 = vunpack.c.h.b16 %v1407
    %v2093 = vunpack.c.l.b16 %v1408
    %v2094 = vunpack.c.h.b16 %v1408
    %v2095 = vunpack.c.l.b16 %v1409
    %v2096 = vunpack.c.h.b16 %v1409
    %v2097 = vunpack.c.l.b16 %v1410
    %v2098 = vunpack.c.h.b16 %v1410
    %v2099 = vunpack.c.l.b16 %v1411
    %v2100 = vunpack.c.h.b16 %v1411
    %v2101 = vunpack.c.l.b16 %v1412
    %v2102 = vunpack.c.h.b16 %v1412
    %v2103 = vunpack.c.l.b16 %v1413
    %v2104 = vunpack.c.h.b16 %v1413
    %v2105 = vunpack.c.l.b16 %v1414
    %v2106 = vunpack.c.h.b16 %v1414
    %v2107 = vunpack.c.l.b16 %v1415
    %v2108 = vunpack.c.h.b16 %v1415
    %v2109 = vunpack.c.l.b16 %v1416
    %v2110 = vunpack.c.h.b16 %v1416
    %v2111 = vunpack.c.l.b16 %v1417
    %v2112 = vunpack.c.h.b16 %v1417
    %v2113 = vunpack.c.l.b16 %v1418
    %v2114 = vunpack.c.h.b16 %v1418
    %v2115 = vunpack.c.l.b16 %v1419
    %v2116 = vunpack.c.h.b16 %v1419
    %v2117 = vunpack.c.l.b16 %v1420
    %v2118 = vunpack.c.h.b16 %v1420
    %v2119 = vunpack.c.l.b16 %v1421
    %v2120 = vunpack.c.h.b16 %v1421
    %v2121 = vunpack.c.l.b16 %v1422
    %v2122 = vunpack.c.h.b16 %v1422
    %v2123 = vunpack.c.l.b16 %v1423
    %v2124 = vunpack.c.h.b16 %v1423
    %v2125 = vunpack.c.l.b16 %v1424
    %v2126 = vunpack.c.h.b16 %v1424
    %v2127 = vunpack.c.l.b16 %v1425
    %v2128 = vunpack.c.h.b16 %v1425
    %v2129 = vunpack.c.l.b16 %v1426
    %v2130 = vunpack.c.h.b16 %v1426
    %v2131 = vunpack.c.l.b16 %v1427
    %v2132 = vunpack.c.h.b16 %v1427
    %v2133 = vunpack.c.l.b16 %v1428
    %v2134 = vunpack.c.h.b16 %v1428
    %v2135 = vunpack.c.l.b16 %v1429
    %v2136 = vunpack.c.h.b16 %v1429
    %v2137 = vunpack.c.l.b16 %v1430
    %v2138 = vunpack.c.h.b16 %v1430
    %v2139 = vunpack.c.l.b16 %v1431
    %v2140 = vunpack.c.h.b16 %v1431
    %v2141 = vunpack.c.l.b16 %v1432
    %v2142 = vunpack.c.h.b16 %v1432
    %v2143 = vunpack.c.l.b16 %v1433
    %v2144 = vunpack.c.h.b16 %v1433
    %v2145 = vunpack.c.l.b16 %v1434
    %v2146 = vunpack.c.h.b16 %v1434
    %v2147 = vunpack.c.l.b16 %v1435
    %v2148 = vunpack.c.h.b16 %v1435
    %v2149 = vunpack.c.l.b16 %v1436
    %v2150 = vunpack.c.h.b16 %v1436
    %v2151 = vunpack.c.l.b16 %v1437
    %v2152 = vunpack.c.h.b16 %v1437
    %v2153 = vunpack.c.l.b16 %v1438
    %v2154 = vunpack.c.h.b16 %v1438
    %v2155 = vunpack.c.l.b16 %v1439
    %v2156 = vunpack.c.h.b16 %v1439
    %v2157 = vunpack.c.l.b16 %v1440
    %v2158 = vunpack.c.h.b16 %v1440
    %v2159 = vunpack.c.l.b16 %v1441
    %v2160 = vunpack.c.h.b16 %v1441
    %v2161 = vunpack.c.l.b16 %v1442
    %v2162 = vunpack.c.h.b16 %v1442
    %v2163 = vunpack.c.l.b16 %v1443
    %v2164 = vunpack.c.h.b16 %v1443
    %v2165 = vunpack.c.l.b16 %v1444
    %v2166 = vunpack.c.h.b16 %v1444
    %v2167 = vunpack.c.l.b16 %v1445
    %v2168 = vunpack.c.h.b16 %v1445
    %v2169 = vunpack.c.l.b16 %v1446
    %v2170 = vunpack.c.h.b16 %v1446
    %v2171 = vunpack.c.l.b16 %v1447
    %v2172 = vunpack.c.h.b16 %v1447
    %v2173 = vunpack.c.l.b16 %v1448
    %v2174 = vunpack.c.h.b16 %v1448
    %v2175 = vunpack.c.l.b16 %v1449
    %v2176 = vunpack.c.h.b16 %v1449
    %v2177 = vunpack.c.l.b16 %v1450
    %v2178 = vunpack.c.h.b16 %v1450
    %v2179 = vunpack.c.l.b16 %v1451
    %v2180 = vunpack.c.h.b16 %v1451
    %v2181 = vunpack.c.l.b16 %v1452
    %v2182 = vunpack.c.h.b16 %v1452
    %v2183 = vunpack.c.l.b16 %v1453
    %v2184 = vunpack.c.h.b16 %v1453
    %v2185 = vunpack.c.l.b16 %v1454
    %v2186 = vunpack.c.h.b16 %v1454
    %v2187 = vunpack.c.l.b16 %v1455
    %v2188 = vunpack.c.h.b16 %v1455
    %v2189 = vunpack.c.l.b16 %v1456
    %v2190 = vunpack.c.h.b16 %v1456
    %v2191 = vunpack.c.l.b16 %v1457
    %v2192 = vunpack.c.h.b16 %v1457
    %v2193 = vunpack.c.l.b16 %v1458
    %v2194 = vunpack.c.h.b16 %v1458
    %v2195 = vunpack.c.l.b16 %v1459
    %v2196 = vunpack.c.h.b16 %v1459
    %v2197 = vunpack.c.l.b16 %v1460
    %v2198 = vunpack.c.h.b16 %v1460
    %v2199 = vunpack.c.l.b16 %v1461
    %v2200 = vunpack.c.h.b16 %v1461
    %v2201 = vunpack.c.l.b16 %v1462
    %v2202 = vunpack.c.h.b16 %v1462
    %v2203 = vunpack.c.l.b16 %v1463
    %v2204 = vunpack.c.h.b16 %v1463
    %v2205 = vunpack.c.l.b16 %v1464
    %v2206 = vunpack.c.h.b16 %v1464
    %v2207 = vunpack.c.l.b16 %v1465
    %v2208 = vunpack.c.h.b16 %v1465
    %v2209 = vunpack.c.l.b16 %v1466
    %v2210 = vunpack.c.h.b16 %v1466
    %v2211 = vunpack.c.l.b16 %v1467
    %v2212 = vunpack.c.h.b16 %v1467
    %v2213 = vunpack.c.l.b16 %v1468
    %v2214 = vunpack.c.h.b16 %v1468
    %v2215 = vunpack.c.l.b16 %v1469
    %v2216 = vunpack.c.h.b16 %v1469
    %v2217 = vunpack.c.l.b16 %v1470
    %v2218 = vunpack.c.h.b16 %v1470
    %v2219 = vunpack.c.l.b16 %v1471
    %v2220 = vunpack.c.h.b16 %v1471
    %v2221 = vunpack.c.l.b16 %v1472
    %v2222 = vunpack.c.h.b16 %v1472
    %v2223 = vunpack.c.l.b16 %v1473
    %v2224 = vunpack.c.h.b16 %v1473
    %v2225 = vunpack.c.l.b16 %v1474
    %v2226 = vunpack.c.h.b16 %v1474
    %v2227 = vunpack.c.l.b16 %v1475
    %v2228 = vunpack.c.h.b16 %v1475
    %v2229 = vunpack.c.l.b16 %v1476
    %v2230 = vunpack.c.h.b16 %v1476
    %v2231 = vunpack.c.l.b16 %v1477
    %v2232 = vunpack.c.h.b16 %v1477
    %v2233 = vunpack.c.l.b16 %v1478
    %v2234 = vunpack.c.h.b16 %v1478
    %v2235 = vunpack.c.l.b16 %v1479
    %v2236 = vunpack.c.h.b16 %v1479
    %v2237 = vunpack.c.l.b16 %v1480
    %v2238 = vunpack.c.h.b16 %v1480
    %v2239 = vunpack.c.l.b16 %v1481
    %v2240 = vunpack.c.h.b16 %v1481
    %v2241 = vunpack.c.l.b16 %v1482
    %v2242 = vunpack.c.h.b16 %v1482
    %v2243 = vunpack.c.l.b16 %v1483
    %v2244 = vunpack.c.h.b16 %v1483
    %v2245 = vunpack.c.l.b16 %v1484
    %v2246 = vunpack.c.h.b16 %v1484
    %v2247 = vunpack.c.l.b16 %v1485
    %v2248 = vunpack.c.h.b16 %v1485
    %v2249 = vunpack.c.l.b16 %v1486
    %v2250 = vunpack.c.h.b16 %v1486
    %v2251 = vunpack.c.l.b16 %v1487
    %v2252 = vunpack.c.h.b16 %v1487
    %v2253 = vunpack.c.l.b16 %v1488
    %v2254 = vunpack.c.h.b16 %v1488
    %v2255 = vunpack.c.l.b16 %v1489
    %v2256 = vunpack.c.h.b16 %v1489
    %v2257 = vunpack.c.l.b16 %v1490
    %v2258 = vunpack.c.h.b16 %v1490
    %v2259 = vunpack.c.l.b16 %v1491
    %v2260 = vunpack.c.h.b16 %v1491
    %v2261 = vunpack.c.l.b16 %v1492
    %v2262 = vunpack.c.h.b16 %v1492
    %v2263 = vunpack.c.l.b16 %v1493
    %v2264 = vunpack.c.h.b16 %v1493
    %v2265 = vunpack.c.l.b16 %v1494
    %v2266 = vunpack.c.h.b16 %v1494
    %v2267 = vunpack.c.l.b16 %v1495
    %v2268 = vunpack.c.h.b16 %v1495
    %v2269 = vunpack.c.l.b16 %v1496
    %v2270 = vunpack.c.h.b16 %v1496
    %v2271 = vunpack.c.l.b16 %v1497
    %v2272 = vunpack.c.h.b16 %v1497
    %v2273 = vunpack.c.l.b16 %v1498
    %v2274 = vunpack.c.h.b16 %v1498
    %v2275 = vunpack.c.l.b16 %v1499
    %v2276 = vunpack.c.h.b16 %v1499
    %v2277 = vunpack.c.l.b16 %v1500
    %v2278 = vunpack.c.h.b16 %v1500
    %v2279 = vunpack.c.l.b16 %v1501
    %v2280 = vunpack.c.h.b16 %v1501
    %v2281 = vunpack.c.l.b16 %v1502
    %v2282 = vunpack.c.h.b16 %v1502
    %v2283 = vpack.c.b16 %v1773, %v1771
    %v2284 = vpack.c.b16 %v1774, %v1772
    %v2285 = vpack.c.b16 %v1777, %v1775
    %v2286 = vpack.c.b16 %v1778, %v1776
    %v2287 = vpack.c.b16 %v1781, %v1779
    %v2288 = vpack.c.b16 %v1782, %v1780
    %v2289 = vpack.c.b16 %v1785, %v1783
    %v2290 = vpack.c.b16 %v1786, %v1784
    %v2291 = vpack.c.b16 %v1789, %v1787
    %v2292 = vpack.c.b16 %v1790, %v1788
    %v2293 = vpack.c.b16 %v1793, %v1791
    %v2294 = vpack.c.b16 %v1794, %v1792
    %v2295 = vpack.c.b16 %v1797, %v1795
    %v2296 = vpack.c.b16 %v1798, %v1796
    %v2297 = vpack.c.b16 %v1801, %v1799
    %v2298 = vpack.c.b16 %v1802, %v1800
    %v2299 = vpack.c.b16 %v1805, %v1803
    %v2300 = vpack.c.b16 %v1806, %v1804
    %v2301 = vpack.c.b16 %v1809, %v1807
    %v2302 = vpack.c.b16 %v1810, %v1808
    %v2303 = vpack.c.b16 %v1813, %v1811
    %v2304 = vpack.c.b16 %v1814, %v1812
    %v2305 = vpack.c.b16 %v1817, %v1815
    %v2306 = vpack.c.b16 %v1818, %v1816
    %v2307 = vpack.c.b16 %v1821, %v1819
    %v2308 = vpack.c.b16 %v1822, %v1820
    %v2309 = vpack.c.b16 %v1825, %v1823
    %v2310 = vpack.c.b16 %v1826, %v1824
    %v2311 = vpack.c.b16 %v1829, %v1827
    %v2312 = vpack.c.b16 %v1830, %v1828
    %v2313 = vpack.c.b16 %v1833, %v1831
    %v2314 = vpack.c.b16 %v1834, %v1832
    %v2315 = vpack.c.b16 %v1837, %v1835
    %v2316 = vpack.c.b16 %v1838, %v1836
    %v2317 = vpack.c.b16 %v1841, %v1839
    %v2318 = vpack.c.b16 %v1842, %v1840
    %v2319 = vpack.c.b16 %v1845, %v1843
    %v2320 = vpack.c.b16 %v1846, %v1844
    %v2321 = vpack.c.b16 %v1849, %v1847
    %v2322 = vpack.c.b16 %v1850, %v1848
    %v2323 = vpack.c.b16 %v1853, %v1851
    %v2324 = vpack.c.b16 %v1854, %v1852
    %v2325 = vpack.c.b16 %v1857, %v1855
    %v2326 = vpack.c.b16 %v1858, %v1856
    %v2327 = vpack.c.b16 %v1861, %v1859
    %v2328 = vpack.c.b16 %v1862, %v1860
    %v2329 = vpack.c.b16 %v1865, %v1863
    %v2330 = vpack.c.b16 %v1866, %v1864
    %v2331 = vpack.c.b16 %v1869, %v1867
    %v2332 = vpack.c.b16 %v1870, %v1868
    %v2333 = vpack.c.b16 %v1873, %v1871
    %v2334 = vpack.c.b16 %v1874, %v1872
    %v2335 = vpack.c.b16 %v1877, %v1875
    %v2336 = vpack.c.b16 %v1878, %v1876
    %v2337 = vpack.c.b16 %v1881, %v1879
    %v2338 = vpack.c.b16 %v1882, %v1880
    %v2339 = vpack.c.b16 %v1885, %v1883
    %v2340 = vpack.c.b16 %v1886, %v1884
    %v2341 = vpack.c.b16 %v1889, %v1887
    %v2342 = vpack.c.b16 %v1890, %v1888
    %v2343 = vpack.c.b16 %v1893, %v1891
    %v2344 = vpack.c.b16 %v1894, %v1892
    %v2345 = vpack.c.b16 %v1897, %v1895
    %v2346 = vpack.c.b16 %v1898, %v1896
    %v2347 = vpack.c.b16 %v1901, %v1899
    %v2348 = vpack.c.b16 %v1902, %v1900
    %v2349 = vpack.c.b16 %v1905, %v1903
    %v2350 = vpack.c.b16 %v1906, %v1904
    %v2351 = vpack.c.b16 %v1909, %v1907
    %v2352 = vpack.c.b16 %v1910, %v1908
    %v2353 = vpack.c.b16 %v1913, %v1911
    %v2354 = vpack.c.b16 %v1914, %v1912
    %v2355 = vpack.c.b16 %v1917, %v1915
    %v2356 = vpack.c.b16 %v1918, %v1916
    %v2357 = vpack.c.b16 %v1921, %v1919
    %v2358 = vpack.c.b16 %v1922, %v1920
    %v2359 = vpack.c.b16 %v1925, %v1923
    %v2360 = vpack.c.b16 %v1926, %v1924
    %v2361 = vpack.c.b16 %v1929, %v1927
    %v2362 = vpack.c.b16 %v1930, %v1928
    %v2363 = vpack.c.b16 %v1933, %v1931
    %v2364 = vpack.c.b16 %v1934, %v1932
    %v2365 = vpack.c.b16 %v1937, %v1935
    %v2366 = vpack.c.b16 %v1938, %v1936
    %v2367 = vpack.c.b16 %v1941, %v1939
    %v2368 = vpack.c.b16 %v1942, %v1940
    %v2369 = vpack.c.b16 %v1945, %v1943
    %v2370 = vpack.c.b16 %v1946, %v1944
    %v2371 = vpack.c.b16 %v1949, %v1947
    %v2372 = vpack.c.b16 %v1950, %v1948
    %v2373 = vpack.c.b16 %v1953, %v1951
    %v2374 = vpack.c.b16 %v1954, %v1952
    %v2375 = vpack.c.b16 %v1957, %v1955
    %v2376 = vpack.c.b16 %v1958, %v1956
    %v2377 = vpack.c.b16 %v1961, %v1959
    %v2378 = vpack.c.b16 %v1962, %v1960
    %v2379 = vpack.c.b16 %v1965, %v1963
    %v2380 = vpack.c.b16 %v1966, %v1964
    %v2381 = vpack.c.b16 %v1969, %v1967
    %v2382 = vpack.c.b16 %v1970, %v1968
    %v2383 = vpack.c.b16 %v1973, %v1971
    %v2384 = vpack.c.b16 %v1974, %v1972
    %v2385 = vpack.c.b16 %v1977, %v1975
    %v2386 = vpack.c.b16 %v1978, %v1976
    %v2387 = vpack.c.b16 %v1981, %v1979
    %v2388 = vpack.c.b16 %v1982, %v1980
    %v2389 = vpack.c.b16 %v1985, %v1983
    %v2390 = vpack.c.b16 %v1986, %v1984
    %v2391 = vpack.c.b16 %v1989, %v1987
    %v2392 = vpack.c.b16 %v1990, %v1988
    %v2393 = vpack.c.b16 %v1993, %v1991
    %v2394 = vpack.c.b16 %v1994, %v1992
    %v2395 = vpack.c.b16 %v1997, %v1995
    %v2396 = vpack.c.b16 %v1998, %v1996
    %v2397 = vpack.c.b16 %v2001, %v1999
    %v2398 = vpack.c.b16 %v2002, %v2000
    %v2399 = vpack.c.b16 %v2005, %v2003
    %v2400 = vpack.c.b16 %v2006, %v2004
    %v2401 = vpack.c.b16 %v2009, %v2007
    %v2402 = vpack.c.b16 %v2010, %v2008
    %v2403 = vpack.c.b16 %v2013, %v2011
    %v2404 = vpack.c.b16 %v2014, %v2012
    %v2405 = vpack.c.b16 %v2017, %v2015
    %v2406 = vpack.c.b16 %v2018, %v2016
    %v2407 = vpack.c.b16 %v2021, %v2019
    %v2408 = vpack.c.b16 %v2022, %v2020
    %v2409 = vpack.c.b16 %v2025, %v2023
    %v2410 = vpack.c.b16 %v2026, %v2024
    %v2411 = vpack.c.b16 %v2029, %v2027
    %v2412 = vpack.c.b16 %v2030, %v2028
    %v2413 = vpack.c.b16 %v2033, %v2031
    %v2414 = vpack.c.b16 %v2034, %v2032
    %v2415 = vpack.c.b16 %v2037, %v2035
    %v2416 = vpack.c.b16 %v2038, %v2036
    %v2417 = vpack.c.b16 %v2041, %v2039
    %v2418 = vpack.c.b16 %v2042, %v2040
    %v2419 = vpack.c.b16 %v2045, %v2043
    %v2420 = vpack.c.b16 %v2046, %v2044
    %v2421 = vpack.c.b16 %v2049, %v2047
    %v2422 = vpack.c.b16 %v2050, %v2048
    %v2423 = vpack.c.b16 %v2053, %v2051
    %v2424 = vpack.c.b16 %v2054, %v2052
    %v2425 = vpack.c.b16 %v2057, %v2055
    %v2426 = vpack.c.b16 %v2058, %v2056
    %v2427 = vpack.c.b16 %v2061, %v2059
    %v2428 = vpack.c.b16 %v2062, %v2060
    %v2429 = vpack.c.b16 %v2065, %v2063
    %v2430 = vpack.c.b16 %v2066, %v2064
    %v2431 = vpack.c.b16 %v2069, %v2067
    %v2432 = vpack.c.b16 %v2070, %v2068
    %v2433 = vpack.c.b16 %v2073, %v2071
    %v2434 = vpack.c.b16 %v2074, %v2072
    %v2435 = vpack.c.b16 %v2077, %v2075
    %v2436 = vpack.c.b16 %v2078, %v2076
    %v2437 = vpack.c.b16 %v2081, %v2079
    %v2438 = vpack.c.b16 %v2082, %v2080
    %v2439 = vpack.c.b16 %v2085, %v2083
    %v2440 = vpack.c.b16 %v2086, %v2084
    %v2441 = vpack.c.b16 %v2089, %v2087
    %v2442 = vpack.c.b16 %v2090, %v2088
    %v2443 = vpack.c.b16 %v2093, %v2091
    %v2444 = vpack.c.b16 %v2094, %v2092
    %v2445 = vpack.c.b16 %v2097, %v2095
    %v2446 = vpack.c.b16 %v2098, %v2096
    %v2447 = vpack.c.b16 %v2101, %v2099
    %v2448 = vpack.c.b16 %v2102, %v2100
    %v2449 = vpack.c.b16 %v2105, %v2103
    %v2450 = vpack.c.b16 %v2106, %v2104
    %v2451 = vpack.c.b16 %v2109, %v2107
    %v2452 = vpack.c.b16 %v2110, %v2108
    %v2453 = vpack.c.b16 %v2113, %v2111
    %v2454 = vpack.c.b16 %v2114, %v2112
    %v2455 = vpack.c.b16 %v2117, %v2115
    %v2456 = vpack.c.b16 %v2118, %v2116
    %v2457 = vpack.c.b16 %v2121, %v2119
    %v2458 = vpack.c.b16 %v2122, %v2120
    %v2459 = vpack.c.b16 %v2125, %v2123
    %v2460 = vpack.c.b16 %v2126, %v2124
    %v2461 = vpack.c.b16 %v2129, %v2127
    %v2462 = vpack.c.b16 %v2130, %v2128
    %v2463 = vpack.c.b16 %v2133, %v2131
    %v2464 = vpack.c.b16 %v2134, %v2132
    %v2465 = vpack.c.b16 %v2137, %v2135
    %v2466 = vpack.c.b16 %v2138, %v2136
    %v2467 = vpack.c.b16 %v2141, %v2139
    %v2468 = vpack.c.b16 %v2142, %v2140
    %v2469 = vpack.c.b16 %v2145, %v2143
    %v2470 = vpack.c.b16 %v2146, %v2144
    %v2471 = vpack.c.b16 %v2149, %v2147
    %v2472 = vpack.c.b16 %v2150, %v2148
    %v2473 = vpack.c.b16 %v2153, %v2151
    %v2474 = vpack.c.b16 %v2154, %v2152
    %v2475 = vpack.c.b16 %v2157, %v2155
    %v2476 = vpack.c.b16 %v2158, %v2156
    %v2477 = vpack.c.b16 %v2161, %v2159
    %v2478 = vpack.c.b16 %v2162, %v2160
    %v2479 = vpack.c.b16 %v2165, %v2163
    %v2480 = vpack.c.b16 %v2166, %v2164
    %v2481 = vpack.c.b16 %v2169, %v2167
    %v2482 = vpack.c.b16 %v2170, %v2168
    %v2483 = vpack.c.b16 %v2173, %v2171
    %v2484 = vpack.c.b16 %v2174, %v2172
    %v2485 = vpack.c.b16 %v2177, %v2175
    %v2486 = vpack.c.b16 %v2178, %v2176
    %v2487 = vpack.c.b16 %v2181, %v2179
    %v2488 = vpack.c.b16 %v2182, %v2180
    %v2489 = vpack.c.b16 %v2185, %v2183
    %v2490 = vpack.c.b16 %v2186, %v2184
    %v2491 = vpack.c.b16 %v2189, %v2187
    %v2492 = vpack.c.b16 %v2190, %v2188
    %v2493 = vpack.c.b16 %v2193, %v2191
    %v2494 = vpack.c.b16 %v2194, %v2192
    %v2495 = vpack.c.b16 %v2197, %v2195
    %v2496 = vpack.c.b16 %v2198, %v2196
    %v2497 = vpack.c.b16 %v2201, %v2199
    %v2498 = vpack.c.b16 %v2202, %v2200
    %v2499 = vpack.c.b16 %v2205, %v2203
    %v2500 = vpack.c.b16 %v2206, %v2204
    %v2501 = vpack.c.b16 %v2209, %v2207
    %v2502 = vpack.c.b16 %v2210, %v2208
    %v2503 = vpack.c.b16 %v2213, %v2211
    %v2504 = vpack.c.b16 %v2214, %v2212
    %v2505 = vpack.c.b16 %v2217, %v2215
    %v2506 = vpack.c.b16 %v2218, %v2216
    %v2507 = vpack.c.b16 %v2221, %v2219
    %v2508 = vpack.c.b16 %v2222, %v2220
    %v2509 = vpack.c.b16 %v2225, %v2223
    %v2510 = vpack.c.b16 %v2226, %v2224
    %v2511 = vpack.c.b16 %v2229, %v2227
    %v2512 = vpack.c.b16 %v2230, %v2228
    %v2513 = vpack.c.b16 %v2233, %v2231
    %v2514 = vpack.c.b16 %v2234, %v2232
    %v2515 = vpack.c.b16 %v2237, %v2235
    %v2516 = vpack.c.b16 %v2238, %v2236
    %v2517 = vpack.c.b16 %v2241, %v2239
    %v2518 = vpack.c.b16 %v2242, %v2240
    %v2519 = vpack.c.b16 %v2245, %v2243
    %v2520 = vpack.c.b16 %v2246, %v2244
    %v2521 = vpack.c.b16 %v2249, %v2247
    %v2522 = vpack.c.b16 %v2250, %v2248
    %v2523 = vpack.c.b16 %v2253, %v2251
    %v2524 = vpack.c.b16 %v2254, %v2252
    %v2525 = vpack.c.b16 %v2257, %v2255
    %v2526 = vpack.c.b16 %v2258, %v2256
    %v2527 = vpack.c.b16 %v2261, %v2259
    %v2528 = vpack.c.b16 %v2262, %v2260
    %v2529 = vpack.c.b16 %v2265, %v2263
    %v2530 = vpack.c.b16 %v2266, %v2264
    %v2531 = vpack.c.b16 %v2269, %v2267
    %v2532 = vpack.c.b16 %v2270, %v2268
    %v2533 = vpack.c.b16 %v2273, %v2271
    %v2534 = vpack.c.b16 %v2274, %v2272
    %v2535 = vpack.c.b16 %v2277, %v2275
    %v2536 = vpack.c.b16 %v2278, %v2276
    %v2537 = vpack.c.b16 %v2281, %v2279
    %v2538 = vpack.c.b16 %v2282, %v2280
    %2795 = vmatprep.subr.bf16.mxu0 %v2284
    %2796 = vmatpush1.bf16.msra.mxu0 %v2283
    %2797 = vmatprep.subr.bf16.mxu0 %v2286
    %2798 = vmatpush1.bf16.msra.mxu0 %v2285
    %2799 = vmatprep.subr.bf16.mxu0 %v2288
    %2800 = vmatpush1.bf16.msra.mxu0 %v2287
    %2801 = vmatprep.subr.bf16.mxu0 %v2290
    %2802 = vmatpush1.bf16.msra.mxu0 %v2289
    %2803 = vmatprep.subr.bf16.mxu0 %v2292
    %2804 = vmatpush1.bf16.msra.mxu0 %v2291
    %2805 = vmatprep.subr.bf16.mxu0 %v2294
    %2806 = vmatpush1.bf16.msra.mxu0 %v2293
    %2807 = vmatprep.subr.bf16.mxu0 %v2296
    %2808 = vmatpush1.bf16.msra.mxu0 %v2295
    %2809 = vmatprep.subr.bf16.mxu0 %v2298
    %2810 = vmatpush1.bf16.msra.mxu0 %v2297
    %2811 = vmatprep.subr.bf16.mxu0 %v2300
    %2812 = vmatpush1.bf16.msra.mxu0 %v2299
    %2813 = vmatprep.subr.bf16.mxu0 %v2302
    %2814 = vmatpush1.bf16.msra.mxu0 %v2301
    %2815 = vmatprep.subr.bf16.mxu0 %v2304
    %2816 = vmatpush1.bf16.msra.mxu0 %v2303
    %2817 = vmatprep.subr.bf16.mxu0 %v2306
    %2818 = vmatpush1.bf16.msra.mxu0 %v2305
    %2819 = vmatprep.subr.bf16.mxu0 %v2308
    %2820 = vmatpush1.bf16.msra.mxu0 %v2307
    %2821 = vmatprep.subr.bf16.mxu0 %v2310
    %2822 = vmatpush1.bf16.msra.mxu0 %v2309
    %2823 = vmatprep.subr.bf16.mxu0 %v2312
    %2824 = vmatpush1.bf16.msra.mxu0 %v2311
    %2825 = vmatprep.subr.bf16.mxu0 %v2314
    %2826 = vmatpush1.bf16.msra.mxu0 %v2313
    %2827 = vmatprep.mubr.bf16.mxu0 %v1232
    %2828 = vmatmul.mubr.bf16.gmra.mrb[0].mxu0 %v1231
    %v2829 = vpop.f32.mrb[0].mxu0
    %v2830 = vadd.f32 %v1508, %v2829
    %v2831 = vpop.f32.mrb[0].mxu0
    %v2832 = vadd.f32 %v1512, %v2831
    %v2833 = vpop.f32.mrb[0].mxu0
    %v2834 = vpop.f32.mrb[0].mxu0
    %2835 = vdwg.mxu0
    %2836 = vmatprep.subr.bf16.mxu0 %v2316
    %2837 = vmatpush1.bf16.msra.mxu0 %v2315
    %2838 = vmatprep.subr.bf16.mxu0 %v2318
    %2839 = vmatpush1.bf16.msra.mxu0 %v2317
    %2840 = vmatprep.subr.bf16.mxu0 %v2320
    %2841 = vmatpush1.bf16.msra.mxu0 %v2319
    %2842 = vmatprep.subr.bf16.mxu0 %v2322
    %2843 = vmatpush1.bf16.msra.mxu0 %v2321
    %2844 = vmatprep.subr.bf16.mxu0 %v2324
    %2845 = vmatpush1.bf16.msra.mxu0 %v2323
    %2846 = vmatprep.subr.bf16.mxu0 %v2326
    %2847 = vmatpush1.bf16.msra.mxu0 %v2325
    %2848 = vmatprep.subr.bf16.mxu0 %v2328
    %2849 = vmatpush1.bf16.msra.mxu0 %v2327
    %2850 = vmatprep.subr.bf16.mxu0 %v2330
    %2851 = vmatpush1.bf16.msra.mxu0 %v2329
    %2852 = vmatprep.subr.bf16.mxu0 %v2332
    %2853 = vmatpush1.bf16.msra.mxu0 %v2331
    %2854 = vmatprep.subr.bf16.mxu0 %v2334
    %2855 = vmatpush1.bf16.msra.mxu0 %v2333
    %2856 = vmatprep.subr.bf16.mxu0 %v2336
    %2857 = vmatpush1.bf16.msra.mxu0 %v2335
    %2858 = vmatprep.subr.bf16.mxu0 %v2338
    %2859 = vmatpush1.bf16.msra.mxu0 %v2337
    %2860 = vmatprep.subr.bf16.mxu0 %v2340
    %2861 = vmatpush1.bf16.msra.mxu0 %v2339
    %2862 = vmatprep.subr.bf16.mxu0 %v2342
    %2863 = vmatpush1.bf16.msra.mxu0 %v2341
    %2864 = vmatprep.subr.bf16.mxu0 %v2344
    %2865 = vmatpush1.bf16.msra.mxu0 %v2343
    %2866 = vmatprep.subr.bf16.mxu0 %v2346
    %2867 = vmatpush1.bf16.msra.mxu0 %v2345
    %2868 = vmatprep.mubr.bf16.mxu0 %v1234
    %2869 = vmatmul.mubr.bf16.gmra.mrb[0].mxu0 %v1233
    %v2870 = vpop.f32.mrb[0].mxu0
    %v2871 = vadd.f32 %v2830, %v2870
    %v2872 = vpop.f32.mrb[0].mxu0
    %v2873 = vadd.f32 %v2832, %v2872
    %v2874 = vpop.f32.mrb[0].mxu0
    %v2875 = vpop.f32.mrb[0].mxu0
    %2876 = vdwg.mxu0
    %2877 = vmatprep.subr.bf16.mxu0 %v2348
    %2878 = vmatpush1.bf16.msra.mxu0 %v2347
    %2879 = vmatprep.subr.bf16.mxu0 %v2350
    %2880 = vmatpush1.bf16.msra.mxu0 %v2349
    %2881 = vmatprep.subr.bf16.mxu0 %v2352
    %2882 = vmatpush1.bf16.msra.mxu0 %v2351
    %2883 = vmatprep.subr.bf16.mxu0 %v2354
    %2884 = vmatpush1.bf16.msra.mxu0 %v2353
    %2885 = vmatprep.subr.bf16.mxu0 %v2356
    %2886 = vmatpush1.bf16.msra.mxu0 %v2355
    %2887 = vmatprep.subr.bf16.mxu0 %v2358
    %2888 = vmatpush1.bf16.msra.mxu0 %v2357
    %2889 = vmatprep.subr.bf16.mxu0 %v2360
    %2890 = vmatpush1.bf16.msra.mxu0 %v2359
    %2891 = vmatprep.subr.bf16.mxu0 %v2362
    %2892 = vmatpush1.bf16.msra.mxu0 %v2361
    %2893 = vmatprep.subr.bf16.mxu0 %v2364
    %2894 = vmatpush1.bf16.msra.mxu0 %v2363
    %2895 = vmatprep.subr.bf16.mxu0 %v2366
    %2896 = vmatpush1.bf16.msra.mxu0 %v2365
    %2897 = vmatprep.subr.bf16.mxu0 %v2368
    %2898 = vmatpush1.bf16.msra.mxu0 %v2367
    %2899 = vmatprep.subr.bf16.mxu0 %v2370
    %2900 = vmatpush1.bf16.msra.mxu0 %v2369
    %2901 = vmatprep.subr.bf16.mxu0 %v2372
    %2902 = vmatpush1.bf16.msra.mxu0 %v2371
    %2903 = vmatprep.subr.bf16.mxu0 %v2374
    %2904 = vmatpush1.bf16.msra.mxu0 %v2373
    %2905 = vmatprep.subr.bf16.mxu0 %v2376
    %2906 = vmatpush1.bf16.msra.mxu0 %v2375
    %2907 = vmatprep.subr.bf16.mxu0 %v2378
    %2908 = vmatpush1.bf16.msra.mxu0 %v2377
    %2909 = vmatprep.mubr.bf16.mxu0 %v1236
    %2910 = vmatmul.mubr.bf16.gmra.mrb[0].mxu0 %v1235
    %v2911 = vpop.f32.mrb[0].mxu0
    %v2912 = vadd.f32 %v2871, %v2911
    %v2913 = vpop.f32.mrb[0].mxu0
    %v2914 = vadd.f32 %v2873, %v2913
    %v2915 = vpop.f32.mrb[0].mxu0
    %v2916 = vpop.f32.mrb[0].mxu0
    %2917 = vdwg.mxu0
    %2918 = vmatprep.subr.bf16.mxu0 %v2380
    %2919 = vmatpush1.bf16.msra.mxu0 %v2379
    %2920 = vmatprep.subr.bf16.mxu0 %v2382
    %2921 = vmatpush1.bf16.msra.mxu0 %v2381
    %2922 = vmatprep.subr.bf16.mxu0 %v2384
    %2923 = vmatpush1.bf16.msra.mxu0 %v2383
    %2924 = vmatprep.subr.bf16.mxu0 %v2386
    %2925 = vmatpush1.bf16.msra.mxu0 %v2385
    %2926 = vmatprep.subr.bf16.mxu0 %v2388
    %2927 = vmatpush1.bf16.msra.mxu0 %v2387
    %2928 = vmatprep.subr.bf16.mxu0 %v2390
    %2929 = vmatpush1.bf16.msra.mxu0 %v2389
    %2930 = vmatprep.subr.bf16.mxu0 %v2392
    %2931 = vmatpush1.bf16.msra.mxu0 %v2391
    %2932 = vmatprep.subr.bf16.mxu0 %v2394
    %2933 = vmatpush1.bf16.msra.mxu0 %v2393
    %2934 = vmatprep.subr.bf16.mxu0 %v2396
    %2935 = vmatpush1.bf16.msra.mxu0 %v2395
    %2936 = vmatprep.subr.bf16.mxu0 %v2398
    %2937 = vmatpush1.bf16.msra.mxu0 %v2397
    %2938 = vmatprep.subr.bf16.mxu0 %v2400
    %2939 = vmatpush1.bf16.msra.mxu0 %v2399
    %2940 = vmatprep.subr.bf16.mxu0 %v2402
    %2941 = vmatpush1.bf16.msra.mxu0 %v2401
    %2942 = vmatprep.subr.bf16.mxu0 %v2404
    %2943 = vmatpush1.bf16.msra.mxu0 %v2403
    %2944 = vmatprep.subr.bf16.mxu0 %v2406
    %2945 = vmatpush1.bf16.msra.mxu0 %v2405
    %2946 = vmatprep.subr.bf16.mxu0 %v2408
    %2947 = vmatpush1.bf16.msra.mxu0 %v2407
    %2948 = vmatprep.subr.bf16.mxu0 %v2410
    %2949 = vmatpush1.bf16.msra.mxu0 %v2409
    %2950 = vmatprep.mubr.bf16.mxu0 %v1238
    %2951 = vmatmul.mubr.bf16.gmra.mrb[0].mxu0 %v1237
    %v2952 = vpop.f32.mrb[0].mxu0
    %v2953 = vadd.f32 %v2912, %v2952
    %v2954 = vpop.f32.mrb[0].mxu0
    %v2955 = vadd.f32 %v2914, %v2954
    %v2956 = vpop.f32.mrb[0].mxu0
    %v2957 = vpop.f32.mrb[0].mxu0
    %2958 = vdwg.mxu0
    %2959 = vmatprep.subr.bf16.mxu0 %v2412
    %2960 = vmatpush1.bf16.msra.mxu0 %v2411
    %2961 = vmatprep.subr.bf16.mxu0 %v2414
    %2962 = vmatpush1.bf16.msra.mxu0 %v2413
    %2963 = vmatprep.subr.bf16.mxu0 %v2416
    %2964 = vmatpush1.bf16.msra.mxu0 %v2415
    %2965 = vmatprep.subr.bf16.mxu0 %v2418
    %2966 = vmatpush1.bf16.msra.mxu0 %v2417
    %2967 = vmatprep.subr.bf16.mxu0 %v2420
    %2968 = vmatpush1.bf16.msra.mxu0 %v2419
    %2969 = vmatprep.subr.bf16.mxu0 %v2422
    %2970 = vmatpush1.bf16.msra.mxu0 %v2421
    %2971 = vmatprep.subr.bf16.mxu0 %v2424
    %2972 = vmatpush1.bf16.msra.mxu0 %v2423
    %2973 = vmatprep.subr.bf16.mxu0 %v2426
    %2974 = vmatpush1.bf16.msra.mxu0 %v2425
    %2975 = vmatprep.subr.bf16.mxu0 %v2428
    %2976 = vmatpush1.bf16.msra.mxu0 %v2427
    %2977 = vmatprep.subr.bf16.mxu0 %v2430
    %2978 = vmatpush1.bf16.msra.mxu0 %v2429
    %2979 = vmatprep.subr.bf16.mxu0 %v2432
    %2980 = vmatpush1.bf16.msra.mxu0 %v2431
    %2981 = vmatprep.subr.bf16.mxu0 %v2434
    %2982 = vmatpush1.bf16.msra.mxu0 %v2433
    %2983 = vmatprep.subr.bf16.mxu0 %v2436
    %2984 = vmatpush1.bf16.msra.mxu0 %v2435
    %2985 = vmatprep.subr.bf16.mxu0 %v2438
    %2986 = vmatpush1.bf16.msra.mxu0 %v2437
    %2987 = vmatprep.subr.bf16.mxu0 %v2440
    %2988 = vmatpush1.bf16.msra.mxu0 %v2439
    %2989 = vmatprep.subr.bf16.mxu0 %v2442
    %2990 = vmatpush1.bf16.msra.mxu0 %v2441
    %2991 = vmatprep.mubr.bf16.mxu0 %v1240
    %2992 = vmatmul.mubr.bf16.gmra.mrb[0].mxu0 %v1239
    %v2993 = vpop.f32.mrb[0].mxu0
    %v2994 = vadd.f32 %v2953, %v2993
    %v2995 = vpop.f32.mrb[0].mxu0
    %v2996 = vadd.f32 %v2955, %v2995
    %v2997 = vpop.f32.mrb[0].mxu0
    %v2998 = vpop.f32.mrb[0].mxu0
    %2999 = vdwg.mxu0
    %3000 = vmatprep.subr.bf16.mxu0 %v2444
    %3001 = vmatpush1.bf16.msra.mxu0 %v2443
    %3002 = vmatprep.subr.bf16.mxu0 %v2446
    %3003 = vmatpush1.bf16.msra.mxu0 %v2445
    %3004 = vmatprep.subr.bf16.mxu0 %v2448
    %3005 = vmatpush1.bf16.msra.mxu0 %v2447
    %3006 = vmatprep.subr.bf16.mxu0 %v2450
    %3007 = vmatpush1.bf16.msra.mxu0 %v2449
    %3008 = vmatprep.subr.bf16.mxu0 %v2452
    %3009 = vmatpush1.bf16.msra.mxu0 %v2451
    %3010 = vmatprep.subr.bf16.mxu0 %v2454
    %3011 = vmatpush1.bf16.msra.mxu0 %v2453
    %3012 = vmatprep.subr.bf16.mxu0 %v2456
    %3013 = vmatpush1.bf16.msra.mxu0 %v2455
    %3014 = vmatprep.subr.bf16.mxu0 %v2458
    %3015 = vmatpush1.bf16.msra.mxu0 %v2457
    %3016 = vmatprep.subr.bf16.mxu0 %v2460
    %3017 = vmatpush1.bf16.msra.mxu0 %v2459
    %3018 = vmatprep.subr.bf16.mxu0 %v2462
    %3019 = vmatpush1.bf16.msra.mxu0 %v2461
    %3020 = vmatprep.subr.bf16.mxu0 %v2464
    %3021 = vmatpush1.bf16.msra.mxu0 %v2463
    %3022 = vmatprep.subr.bf16.mxu0 %v2466
    %3023 = vmatpush1.bf16.msra.mxu0 %v2465
    %3024 = vmatprep.subr.bf16.mxu0 %v2468
    %3025 = vmatpush1.bf16.msra.mxu0 %v2467
    %3026 = vmatprep.subr.bf16.mxu0 %v2470
    %3027 = vmatpush1.bf16.msra.mxu0 %v2469
    %3028 = vmatprep.subr.bf16.mxu0 %v2472
    %3029 = vmatpush1.bf16.msra.mxu0 %v2471
    %3030 = vmatprep.subr.bf16.mxu0 %v2474
    %3031 = vmatpush1.bf16.msra.mxu0 %v2473
    %3032 = vmatprep.mubr.bf16.mxu0 %v1242
    %3033 = vmatmul.mubr.bf16.gmra.mrb[0].mxu0 %v1241
    %v3034 = vpop.f32.mrb[0].mxu0
    %v3035 = vadd.f32 %v2994, %v3034
    %v3036 = vpop.f32.mrb[0].mxu0
    %v3037 = vadd.f32 %v2996, %v3036
    %v3038 = vpop.f32.mrb[0].mxu0
    %v3039 = vpop.f32.mrb[0].mxu0
    %3040 = vdwg.mxu0
    %3041 = vmatprep.subr.bf16.mxu0 %v2476
    %3042 = vmatpush1.bf16.msra.mxu0 %v2475
    %3043 = vmatprep.subr.bf16.mxu0 %v2478
    %3044 = vmatpush1.bf16.msra.mxu0 %v2477
    %3045 = vmatprep.subr.bf16.mxu0 %v2480
    %3046 = vmatpush1.bf16.msra.mxu0 %v2479
    %3047 = vmatprep.subr.bf16.mxu0 %v2482
    %3048 = vmatpush1.bf16.msra.mxu0 %v2481
    %3049 = vmatprep.subr.bf16.mxu0 %v2484
    %3050 = vmatpush1.bf16.msra.mxu0 %v2483
    %3051 = vmatprep.subr.bf16.mxu0 %v2486
    %3052 = vmatpush1.bf16.msra.mxu0 %v2485
    %3053 = vmatprep.subr.bf16.mxu0 %v2488
    %3054 = vmatpush1.bf16.msra.mxu0 %v2487
    %3055 = vmatprep.subr.bf16.mxu0 %v2490
    %3056 = vmatpush1.bf16.msra.mxu0 %v2489
    %3057 = vmatprep.subr.bf16.mxu0 %v2492
    %3058 = vmatpush1.bf16.msra.mxu0 %v2491
    %3059 = vmatprep.subr.bf16.mxu0 %v2494
    %3060 = vmatpush1.bf16.msra.mxu0 %v2493
    %3061 = vmatprep.subr.bf16.mxu0 %v2496
    %3062 = vmatpush1.bf16.msra.mxu0 %v2495
    %3063 = vmatprep.subr.bf16.mxu0 %v2498
    %3064 = vmatpush1.bf16.msra.mxu0 %v2497
    %3065 = vmatprep.subr.bf16.mxu0 %v2500
    %3066 = vmatpush1.bf16.msra.mxu0 %v2499
    %3067 = vmatprep.subr.bf16.mxu0 %v2502
    %3068 = vmatpush1.bf16.msra.mxu0 %v2501
    %3069 = vmatprep.subr.bf16.mxu0 %v2504
    %3070 = vmatpush1.bf16.msra.mxu0 %v2503
    %3071 = vmatprep.subr.bf16.mxu0 %v2506
    %3072 = vmatpush1.bf16.msra.mxu0 %v2505
    %3073 = vmatprep.mubr.bf16.mxu0 %v1244
    %3074 = vmatmul.mubr.bf16.gmra.mrb[0].mxu0 %v1243
    %v3075 = vpop.f32.mrb[0].mxu0
    %v3076 = vadd.f32 %v3035, %v3075
    %v3077 = vpop.f32.mrb[0].mxu0
    %v3078 = vadd.f32 %v3037, %v3077
    %v3079 = vpop.f32.mrb[0].mxu0
    %v3080 = vpop.f32.mrb[0].mxu0
    %3081 = vdwg.mxu0
    %3082 = vmatprep.subr.bf16.mxu0 %v2508
    %3083 = vmatpush1.bf16.msra.mxu0 %v2507
    %3084 = vmatprep.subr.bf16.mxu0 %v2510
    %3085 = vmatpush1.bf16.msra.mxu0 %v2509
    %3086 = vmatprep.subr.bf16.mxu0 %v2512
    %3087 = vmatpush1.bf16.msra.mxu0 %v2511
    %3088 = vmatprep.subr.bf16.mxu0 %v2514
    %3089 = vmatpush1.bf16.msra.mxu0 %v2513
    %3090 = vmatprep.subr.bf16.mxu0 %v2516
    %3091 = vmatpush1.bf16.msra.mxu0 %v2515
    %3092 = vmatprep.subr.bf16.mxu0 %v2518
    %3093 = vmatpush1.bf16.msra.mxu0 %v2517
    %3094 = vmatprep.subr.bf16.mxu0 %v2520
    %3095 = vmatpush1.bf16.msra.mxu0 %v2519
    %3096 = vmatprep.subr.bf16.mxu0 %v2522
    %3097 = vmatpush1.bf16.msra.mxu0 %v2521
    %3098 = vmatprep.subr.bf16.mxu0 %v2524
    %3099 = vmatpush1.bf16.msra.mxu0 %v2523
    %3100 = vmatprep.subr.bf16.mxu0 %v2526
    %3101 = vmatpush1.bf16.msra.mxu0 %v2525
    %3102 = vmatprep.subr.bf16.mxu0 %v2528
    %3103 = vmatpush1.bf16.msra.mxu0 %v2527
    %3104 = vmatprep.subr.bf16.mxu0 %v2530
    %3105 = vmatpush1.bf16.msra.mxu0 %v2529
    %3106 = vmatprep.subr.bf16.mxu0 %v2532
    %3107 = vmatpush1.bf16.msra.mxu0 %v2531
    %3108 = vmatprep.subr.bf16.mxu0 %v2534
    %3109 = vmatpush1.bf16.msra.mxu0 %v2533
    %3110 = vmatprep.subr.bf16.mxu0 %v2536
    %3111 = vmatpush1.bf16.msra.mxu0 %v2535
    %3112 = vmatprep.subr.bf16.mxu0 %v2538
    %3113 = vmatpush1.bf16.msra.mxu0 %v2537
    %3114 = vmatprep.mubr.bf16.mxu0 %v1246
    %3115 = vmatmul.mubr.bf16.gmra.mrb[0].mxu0 %v1245
    %v3116 = vpop.f32.mrb[0].mxu0
    %v3117 = vadd.f32 %v3076, %v3116
    %v3118 = vpop.f32.mrb[0].mxu0
    %v3119 = vadd.f32 %v3078, %v3118
    %v3120 = vpop.f32.mrb[0].mxu0
    %v3121 = vpop.f32.mrb[0].mxu0
    %3122 = vdwg.mxu0
    %v3123 = vmax.f32 %v3117, 0.0
    %v3124 = vmax.f32 %v3119, 0.0
    %v3125 = vpack.c.bf16 %v3123, %v3123
    %v3126 = vpack.c.bf16 %v3124, %v3124
    %v3127 = vld [vmem:[%s5] sm:$0xf]
    %v3128 = vld [vmem:[%s5 + $0x4] sm:$0xf]
    %v3129 = vld [vmem:[%s5 + $0x8] sm:$0xf]
    %v3130 = vld [vmem:[%s5 + $0xc] sm:$0xf]
    %v3131 = vld [vmem:[%s5 + $0x10] sm:$0xf]
    %v3132 = vld [vmem:[%s5 + $0x14] sm:$0xf]
    %v3133 = vld [vmem:[%s5 + $0x18] sm:$0xf]
    %v3134 = vld [vmem:[%s5 + $0x1c] sm:$0xf]
    %v3135 = vld [vmem:[%s5 + $0x20] sm:$0xf]
    %v3136 = vld [vmem:[%s5 + $0x24] sm:$0xf]
    %v3137 = vld [vmem:[%s5 + $0x28] sm:$0xf]
    %v3138 = vld [vmem:[%s5 + $0x2c] sm:$0xf]
    %v3139 = vld [vmem:[%s5 + $0x30] sm:$0xf]
    %v3140 = vld [vmem:[%s5 + $0x34] sm:$0xf]
    %v3141 = vld [vmem:[%s5 + $0x38] sm:$0xf]
    %v3142 = vld [vmem:[%s5 + $0x3c] sm:$0xf]
    %v3143 = vld [vmem:[%s5 + $0x40] sm:$0xf]
    %v3144 = vld [vmem:[%s5 + $0x44] sm:$0xf]
    %v3145 = vld [vmem:[%s5 + $0x48] sm:$0xf]
    %v3146 = vld [vmem:[%s5 + $0x4c] sm:$0xf]
    %v3147 = vld [vmem:[%s5 + $0x50] sm:$0xf]
    %v3148 = vld [vmem:[%s5 + $0x54] sm:$0xf]
    %v3149 = vld [vmem:[%s5 + $0x58] sm:$0xf]
    %v3150 = vld [vmem:[%s5 + $0x5c] sm:$0xf]
    %v3151 = vld [vmem:[%s5 + $0x60] sm:$0xf]
    %v3152 = vld [vmem:[%s5 + $0x64] sm:$0xf]
    %v3153 = vld [vmem:[%s5 + $0x68] sm:$0xf]
    %v3154 = vld [vmem:[%s5 + $0x6c] sm:$0xf]
    %v3155 = vld [vmem:[%s5 + $0x70] sm:$0xf]
    %v3156 = vld [vmem:[%s5 + $0x74] sm:$0xf]
    %v3157 = vld [vmem:[%s5 + $0x78] sm:$0xf]
    %v3158 = vld [vmem:[%s5 + $0x7c] sm:$0xf]
    %v3159 = vld [vmem:[%s6] sm:$0x1]
    %v3161 = vlaneseq
    %v3162 = vshrl.u32 %v3161, 7
    %v3163 = vsub.s32 0, %v3162
    %v3164 = vrot.slane %v3159, %v3163
    %v3198 = vunpack.c.l.b16 %v3127
    %v3199 = vunpack.c.l.b16 %v3128
    %v3200 = vunpack.c.l.b16 %v3129
    %v3201 = vunpack.c.l.b16 %v3130
    %v3202 = vunpack.c.l.b16 %v3131
    %v3203 = vunpack.c.l.b16 %v3132
    %v3204 = vunpack.c.l.b16 %v3133
    %v3205 = vunpack.c.l.b16 %v3134
    %v3206 = vunpack.c.l.b16 %v3135
    %v3207 = vunpack.c.l.b16 %v3136
    %v3208 = vunpack.c.l.b16 %v3137
    %v3209 = vunpack.c.l.b16 %v3138
    %v3210 = vunpack.c.l.b16 %v3139
    %v3211 = vunpack.c.l.b16 %v3140
    %v3212 = vunpack.c.l.b16 %v3141
    %v3213 = vunpack.c.l.b16 %v3142
    %v3214 = vunpack.c.l.b16 %v3143
    %v3215 = vunpack.c.l.b16 %v3144
    %v3216 = vunpack.c.l.b16 %v3145
    %v3217 = vunpack.c.l.b16 %v3146
    %v3218 = vunpack.c.l.b16 %v3147
    %v3219 = vunpack.c.l.b16 %v3148
    %v3220 = vunpack.c.l.b16 %v3149
    %v3221 = vunpack.c.l.b16 %v3150
    %v3222 = vunpack.c.l.b16 %v3151
    %v3223 = vunpack.c.l.b16 %v3152
    %v3224 = vunpack.c.l.b16 %v3153
    %v3225 = vunpack.c.l.b16 %v3154
    %v3226 = vunpack.c.l.b16 %v3155
    %v3227 = vunpack.c.l.b16 %v3156
    %v3228 = vunpack.c.l.b16 %v3157
    %v3229 = vunpack.c.l.b16 %v3158
    %v3230 = vpack.c.b16 %v3199, %v3198
    %v3231 = vpack.c.b16 %v3201, %v3200
    %v3232 = vpack.c.b16 %v3203, %v3202
    %v3233 = vpack.c.b16 %v3205, %v3204
    %v3234 = vpack.c.b16 %v3207, %v3206
    %v3235 = vpack.c.b16 %v3209, %v3208
    %v3236 = vpack.c.b16 %v3211, %v3210
    %v3237 = vpack.c.b16 %v3213, %v3212
    %v3238 = vpack.c.b16 %v3215, %v3214
    %v3239 = vpack.c.b16 %v3217, %v3216
    %v3240 = vpack.c.b16 %v3219, %v3218
    %v3241 = vpack.c.b16 %v3221, %v3220
    %v3242 = vpack.c.b16 %v3223, %v3222
    %v3243 = vpack.c.b16 %v3225, %v3224
    %v3244 = vpack.c.b16 %v3227, %v3226
    %v3245 = vpack.c.b16 %v3229, %v3228
    %3262 = vmatprep.subr.bf16.mxu0 0
    %3263 = vmatpush1.bf16.msra.mxu0 %v3230
    %3264 = vmatprep.subr.bf16.mxu0 0
    %3265 = vmatpush1.bf16.msra.mxu0 %v3231
    %3266 = vmatprep.subr.bf16.mxu0 0
    %3267 = vmatpush1.bf16.msra.mxu0 %v3232
    %3268 = vmatprep.subr.bf16.mxu0 0
    %3269 = vmatpush1.bf16.msra.mxu0 %v3233
    %3270 = vmatprep.subr.bf16.mxu0 0
    %3271 = vmatpush1.bf16.msra.mxu0 %v3234
    %3272 = vmatprep.subr.bf16.mxu0 0
    %3273 = vmatpush1.bf16.msra.mxu0 %v3235
    %3274 = vmatprep.subr.bf16.mxu0 0
    %3275 = vmatpush1.bf16.msra.mxu0 %v3236
    %3276 = vmatprep.subr.bf16.mxu0 0
    %3277 = vmatpush1.bf16.msra.mxu0 %v3237
    %3278 = vmatprep.subr.bf16.mxu0 0
    %3279 = vmatpush1.bf16.msra.mxu0 %v3238
    %3280 = vmatprep.subr.bf16.mxu0 0
    %3281 = vmatpush1.bf16.msra.mxu0 %v3239
    %3282 = vmatprep.subr.bf16.mxu0 0
    %3283 = vmatpush1.bf16.msra.mxu0 %v3240
    %3284 = vmatprep.subr.bf16.mxu0 0
    %3285 = vmatpush1.bf16.msra.mxu0 %v3241
    %3286 = vmatprep.subr.bf16.mxu0 0
    %3287 = vmatpush1.bf16.msra.mxu0 %v3242
    %3288 = vmatprep.subr.bf16.mxu0 0
    %3289 = vmatpush1.bf16.msra.mxu0 %v3243
    %3290 = vmatprep.subr.bf16.mxu0 0
    %3291 = vmatpush1.bf16.msra.mxu0 %v3244
    %3292 = vmatprep.subr.bf16.mxu0 0
    %3293 = vmatpush1.bf16.msra.mxu0 %v3245
    %3294 = vmatprep.mubr.bf16.mxu0 %v3126
    %3295 = vmatmul.mubr.bf16.gmra.mrb[0].mxu0 %v3125
    %v3296 = vpop.f32.mrb[0].mxu0
    %v3297 = vadd.f32 %v3164, %v3296
    %v3298 = vpop.f32.mrb[0].mxu0
    %v3299 = vpop.f32.mrb[0].mxu0
    %v3300 = vpop.f32.mrb[0].mxu0
    %3301 = vdwg.mxu0
    %v3302 = vmax.f32 %v3297, 0.0
    %v3303 = vpack.c.bf16 %v3302, %v3302
    %v3304 = vld [vmem:[%s7] sm:$0xf]
    %v3305 = vld [vmem:[%s7 + $0x4] sm:$0xf]
    %v3306 = vld [vmem:[%s7 + $0x8] sm:$0xf]
    %v3307 = vld [vmem:[%s7 + $0xc] sm:$0xf]
    %v3308 = vld [vmem:[%s7 + $0x10] sm:$0xf]
    %v3309 = vld [vmem:[%s7 + $0x14] sm:$0xf]
    %v3310 = vld [vmem:[%s7 + $0x18] sm:$0xf]
    %v3311 = vld [vmem:[%s7 + $0x1c] sm:$0xf]
    %v3312 = vld [vmem:[%s8] sm:$0x1]
    %v3314 = vlaneseq
    %v3315 = vshrl.u32 %v3314, 7
    %v3316 = vsub.s32 0, %v3315
    %v3317 = vrot.slane %v3312, %v3316
    %v3327 = vunpack.c.l.b16 %v3304
    %v3328 = vunpack.c.l.b16 %v3305
    %v3329 = vunpack.c.l.b16 %v3306
    %v3330 = vunpack.c.l.b16 %v3307
    %v3331 = vunpack.c.l.b16 %v3308
    %v3332 = vunpack.c.l.b16 %v3309
    %v3333 = vunpack.c.l.b16 %v3310
    %v3334 = vunpack.c.l.b16 %v3311
    %v3335 = vpack.c.b16 %v3328, %v3327
    %v3336 = vpack.c.b16 %v3330, %v3329
    %v3337 = vpack.c.b16 %v3332, %v3331
    %v3338 = vpack.c.b16 %v3334, %v3333
    %vm3343 = vcmask 523264
    %v3345 = vsel %vm3343, %v3303, 0
    %3347 = vmatprep.subr.bf16.mxu0 0
    %3348 = vmatpush1.bf16.msra.mxu0 %v3335
    %3349 = vmatprep.subr.bf16.mxu0 0
    %3350 = vmatpush1.bf16.msra.mxu0 %v3336
    %3351 = vmatprep.subr.bf16.mxu0 0
    %3352 = vmatpush1.bf16.msra.mxu0 %v3337
    %3353 = vmatprep.subr.bf16.mxu0 0
    %3354 = vmatpush1.bf16.msra.mxu0 %v3338
    %3355 = vmatprep.subr.bf16.mxu0 0
    %3356 = vmatpush1.bf16.msra.mxu0 0
    %3357 = vmatprep.subr.bf16.mxu0 0
    %3358 = vmatpush1.bf16.msra.mxu0 0
    %3359 = vmatprep.subr.bf16.mxu0 0
    %3360 = vmatpush1.bf16.msra.mxu0 0
    %3361 = vmatprep.subr.bf16.mxu0 0
    %3362 = vmatpush1.bf16.msra.mxu0 0
    %3363 = vmatprep.subr.bf16.mxu0 0
    %3364 = vmatpush1.bf16.msra.mxu0 0
    %3365 = vmatprep.subr.bf16.mxu0 0
    %3366 = vmatpush1.bf16.msra.mxu0 0
    %3367 = vmatprep.subr.bf16.mxu0 0
    %3368 = vmatpush1.bf16.msra.mxu0 0
    %3369 = vmatprep.subr.bf16.mxu0 0
    %3370 = vmatpush1.bf16.msra.mxu0 0
    %3371 = vmatprep.subr.bf16.mxu0 0
    %3372 = vmatpush1.bf16.msra.mxu0 0
    %3373 = vmatprep.subr.bf16.mxu0 0
    %3374 = vmatpush1.bf16.msra.mxu0 0
    %3375 = vmatprep.subr.bf16.mxu0 0
    %3376 = vmatpush1.bf16.msra.mxu0 0
    %3377 = vmatprep.subr.bf16.mxu0 0
    %3378 = vmatpush1.bf16.msra.mxu0 0
    %3379 = vmatprep.mubr.bf16.mxu0 0
    %3380 = vmatmul.mubr.bf16.gmra.mrb[0].mxu0 %v3345
    %v3381 = vpop.f32.mrb[0].mxu0
    %v3382 = vadd.f32 %v3317, %v3381
    %v3383 = vpop.f32.mrb[0].mxu0
    %v3384 = vpop.f32.mrb[0].mxu0
    %v3385 = vpop.f32.mrb[0].mxu0
    %3386 = vdwg.mxu0
    %3387 = vst [vmem:[#allocation2] sm:$0xff] %v3382
    // Predicated region
    $region38: #{classifier_forward.1} parent=1 // pred_check
      _
    $region39: #{classifier_forward.1} parent=1 // pred_check_branch
      %3389 = sbr.rel (0) target = $region41
    $region40: #{classifier_forward.1} parent=1 // pred_region
      %s3391 = ssub.s32 128, 128
      %3392 = vsyncadd [#allocation3], %s3391
      %s3394 = sshll.u32 [#allocation2], 4
      %s3395 = int_to_ptr.vmem [resolvable:$true] %s3394
      %3397 = dma.vmem_to_hbm [thread:$0]  %s3395, 128, %s9, [#allocation3]
    $region41: #{classifier_forward.1} parent=1 // pred_fallthru
      _
    // Predicated region
    $region42: #{classifier_forward.1} parent=1 // pred_check
      _
    $region43: #{classifier_forward.1} parent=1 // pred_check_branch
      %3399 = sbr.rel (0) target = $region45
    $region44: #{classifier_forward.1} parent=1 // pred_region
      %3400 = dma.done [#allocation3], 128
    $region45: #{classifier_forward.1} parent=1 // pred_fallthru
      _
    %3401 = vsyncpa [#allocation3], 1

</llo_original>
